<compile_context>
chip_gen: v6e
topology: v6e:2x2x1
jax: 0.10.0
libtpu: 0.0.40
codegen_flags: <defaults>
</compile_context>

<pallas_src>
import numpy as np
import jax
import jax.numpy as jnp
from jax.experimental import pallas as pl
from jax.experimental.pallas import tpu as pltpu

NUM_THETA = 2
NUM_PHI = 4
VIEW_PE = 2
ASG_FEATURE = 12
HIDDEN = 32
ASG_HIDDEN = NUM_THETA * NUM_PHI * 4          # 32
N_DIRS = NUM_THETA * NUM_PHI                  # 8
IN_MLPC = 2 * VIEW_PE * 3 + 3 + N_DIRS * 2    # 31

# Packed input rows (one (16, T) block per tile): x 0..11 | view 12..14 | ones 15
IN_ROWS = 16

# --- packed constant-slab row offsets (all multiples of 8 for cheap static slicing) ---
ROW_WF = 0        # (64, 16) fused front-end weight (gaussian feat + dots + PE args)
ROW_W1A0 = 64     # (32, 8)  layer-1 partial: cf a0 columns
ROW_W1A1 = 96     # (32, 8)  layer-1 partial: cf a1 columns
ROW_W1SIN = 128   # (32, 8)  layer-1 partial: sin(pe) columns (2 zero cols)
ROW_W1COS = 160   # (32, 8)  layer-1 partial: cos(pe) columns (2 zero cols)
ROW_W1VB = 192    # (32, 16) layer-1 partial: raw viewdirs cols + bias via ones row
ROW_W2 = 224      # (3, 32)  layer-3 weight
ROW_B2 = 232      # (3, 1)   layer-3 bias
SLAB_ROWS = 240
SLAB_COLS = 32


# ---------------------------------------------------------------------------
# Constant omega directions (re-implementation of init_predefined_omega)
# ---------------------------------------------------------------------------
def _spherical2cartesian(theta, phi):
    return (np.sin(theta) * np.cos(phi),
            np.sin(theta) * np.sin(phi),
            np.cos(theta))


def init_predefined_omega(num_theta, num_phi):
    theta_list = np.linspace(0.0, np.pi, num_theta)
    phi_list = np.linspace(0.0, 2.0 * np.pi, num_phi)
    out_o, out_la, out_mu = [], [], []
    for i in range(num_theta):
        theta = theta_list[i]
        for j in range(num_phi):
            phi = phi_list[j]
            omega = np.array(_spherical2cartesian(theta, phi))
            omega_la = np.array(_spherical2cartesian(theta + np.pi / 2.0, phi))
            omega_mu = np.cross(omega, omega_la)
            out_o.append(omega)
            out_la.append(omega_la)
            out_mu.append(omega_mu)
    return (np.stack(out_o).astype(np.float32),     # [8, 3]
            np.stack(out_la).astype(np.float32),    # [8, 3]
            np.stack(out_mu).astype(np.float32))    # [8, 3]


# ---------------------------------------------------------------------------
# Pallas kernel: full SpecularNetworkReal forward for one tile of points (C, T layout)
# ---------------------------------------------------------------------------
def specular_kernel(xv_ref, w_ref, oT_ref):
    xvT = xv_ref[...]                                   # (16, T): x(12) | view(3) | ones(1)

    # Static, sublane-aligned slices of the single packed constant slab.
    Wf = w_ref[ROW_WF:ROW_WF + 64, 0:16]                # (64, 16)
    W1a0 = w_ref[ROW_W1A0:ROW_W1A0 + 32, 0:8]           # (32, 8)
    W1a1 = w_ref[ROW_W1A1:ROW_W1A1 + 32, 0:8]           # (32, 8)
    W1s = w_ref[ROW_W1SIN:ROW_W1SIN + 32, 0:8]          # (32, 8)
    W1c = w_ref[ROW_W1COS:ROW_W1COS + 32, 0:8]          # (32, 8)
    W1vb = w_ref[ROW_W1VB:ROW_W1VB + 32, 0:16]          # (32, 16)
    W2 = w_ref[ROW_W2:ROW_W2 + 3, 0:32]                 # (3, 32)
    b2 = w_ref[ROW_B2:ROW_B2 + 3, 0:1]                  # (3, 1)

    # Single front-end matmul: gaussian_feature (bias & '-1' folded via ones row),
    # omega/omega_la/omega_mu direction dots, and the PE arguments.
    front = jnp.dot(Wf, xvT, preferred_element_type=jnp.float32)      # (64, T)

    lm = jax.nn.softplus(front[16:32, :])                             # la(8) | mu(8)
    smooth = jnp.maximum(front[32:40, :], 0.0)                        # relu(<v, omega>)
    d_la = front[40:48, :]
    d_mu = front[48:56, :]
    s = smooth * jnp.exp(-(lm[0:8, :] * d_la * d_la
                           + lm[8:16, :] * d_mu * d_mu))              # (8, T)

    cf0 = front[0:8, :] * s                                           # a0 * s
    cf1 = front[8:16, :] * s                                          # a1 * s
    pe = front[56:64, :]                                              # 6 PE rows + 2 zero rows
    sin_pe = jnp.sin(pe)
    cos_pe = jnp.cos(pe)                                              # pad rows hit zero weight cols

    # Layer 1 (31 -> 32) as accumulating partials: no mlp_in / concat materialization.
    h = (jnp.dot(W1a0, cf0, preferred_element_type=jnp.float32)
         + jnp.dot(W1a1, cf1, preferred_element_type=jnp.float32)
         + jnp.dot(W1s, sin_pe, preferred_element_type=jnp.float32)
         + jnp.dot(W1c, cos_pe, preferred_element_type=jnp.float32)
         + jnp.dot(W1vb, xvT, preferred_element_type=jnp.float32))    # viewdirs + bias (ones row)
    h = jnp.maximum(h, 0.0)

    # Layer 3 (32 -> 3); output is (3, T): lane-dense unmasked store.
    oT_ref[...] = jnp.dot(W2, h, preferred_element_type=jnp.float32) + b2


def _round_up(a, b):
    return ((a + b - 1) // b) * b


def specular_forward_packed(xvT, const_slab, tile_max=8192):
    """xvT: (16, n_pad) channel-major packed input, n_pad % 512 == 0.  Returns (3, n_pad)."""
    n_pad = xvT.shape[1]
    assert n_pad % 512 == 0
    # Adaptive tile: amortize per-step overhead, but keep >= 4 grid steps when possible
    # (>= 2 per TensorCore on v7x under dimension_semantics=("parallel",)).
    tile_n = int(min(tile_max, max(512, _round_up(-(-n_pad // 4), 512))))
    while n_pad % tile_n != 0:
        tile_n -= 512
    grid = (n_pad // tile_n,)

    return pl.pallas_call(
        specular_kernel,
        out_shape=jax.ShapeDtypeStruct((3, n_pad), jnp.float32),
        grid_spec=pltpu.PrefetchScalarGridSpec(
            num_scalar_prefetch=0,
            grid=grid,
            in_specs=[
                pl.BlockSpec((IN_ROWS, tile_n), lambda i: (0, i)),
                pl.BlockSpec((SLAB_ROWS, SLAB_COLS), lambda i: (0, 0)),
            ],
            out_specs=pl.BlockSpec((3, tile_n), lambda i: (0, i)),
        ),
        compiler_params=pltpu.CompilerParams(
            dimension_semantics=("parallel",),
            vmem_limit_bytes=48 * 1024 * 1024,
        ),
    )(xvT, const_slab)


def specular_forward(x, view, normal, const_slab, tile_max=8192):
    """x: (N, 12), view: (N, 3). `normal` is accepted for interface parity but the
    module's forward never uses it."""
    del normal
    n = x.shape[0]
    n_pad = _round_up(n, 512)
    # Single fused pack(+pad)+transpose: keep point clouds channel-major upstream and
    # call specular_forward_packed() directly to remove this layout op entirely.
    xv = jnp.concatenate([x, view, jnp.ones((n, 1), x.dtype)], axis=1)   # (n, 16)
    if n_pad != n:
        xv = jnp.pad(xv, ((0, n_pad - n), (0, 0)))
    xvT = xv.T                                                           # (16, n_pad)
    outT = specular_forward_packed(xvT, const_slab, tile_max=tile_max)
    return outT.T[:n]


# ---------------------------------------------------------------------------
# Parameter init (deterministic, torch.nn.Linear-like) and constant packing
# ---------------------------------------------------------------------------
def init_linear(key, fan_in, fan_out):
    kw, kb = jax.random.split(key)
    bound = 1.0 / np.sqrt(fan_in)
    w = jax.random.uniform(kw, (fan_in, fan_out), jnp.float32, -bound, bound)
    b = jax.random.uniform(kb, (fan_out,), jnp.float32, -bound, bound)
    return w, b


def build_packed_constants(params, omega, omega_la, omega_mu):
    wg_t = np.asarray(params['wg_t'])      # (12, 32)  [in, out]
    bg = np.asarray(params['bg'])          # (32,)
    w1_t = np.asarray(params['w1_t'])      # (31, 32)  [in, out]
    b1 = np.asarray(params['b1'])          # (32,)
    w2_t = np.asarray(params['w2_t'])      # (32, 3)   [in, out]
    b2 = np.asarray(params['b2'])          # (3,)

    slab = np.zeros((SLAB_ROWS, SLAB_COLS), np.float32)

    # ---- fused front-end weight Wf (64, 16) over packed input [x(12) | view(3) | ones(1)]
    # Rows 0:32  : gaussian_feature outputs permuted to [a0(8) | a1(8) | la(8) | mu(8)],
    #              bias folded into col 15; the '-1' shift folded in for the la/mu rows.
    Wf = np.zeros((64, IN_ROWS), np.float32)
    for c in range(4):
        for d in range(N_DIRS):
            j = 4 * d + c                     # torch gaussian_feature column
            r = 8 * c + d                     # kernel row
            Wf[r, 0:12] = wg_t[:, j]
            Wf[r, 15] = bg[j] - (1.0 if c >= 2 else 0.0)
    # Rows 32:56 : direction dots <view, omega>, <view, omega_la>, <view, omega_mu>
    Wf[32:40, 12:15] = omega
    Wf[40:48, 12:15] = omega_la
    Wf[48:56, 12:15] = omega_mu
    # Rows 56:62 : PE arguments view[i] * 2**f at row 56 + 2*i + f  (rows 62:64 zero pad)
    for i in range(3):
        for f in range(VIEW_PE):
            Wf[56 + VIEW_PE * i + f, 12 + i] = 2.0 ** f
    slab[ROW_WF:ROW_WF + 64, 0:IN_ROWS] = Wf

    # ---- layer-1 partial weights (torch mlp_in cols: cf interleaved 0..15, view 16..18,
    #      sin(pe) 19..24, cos(pe) 25..30)
    W1k = w1_t.T                                              # (32, 31)
    slab[ROW_W1A0:ROW_W1A0 + 32, 0:8] = W1k[:, 0:16:2]        # a0_d * s_d  -> col 2d
    slab[ROW_W1A1:ROW_W1A1 + 32, 0:8] = W1k[:, 1:16:2]        # a1_d * s_d  -> col 2d+1
    slab[ROW_W1SIN:ROW_W1SIN + 32, 0:6] = W1k[:, 19:25]       # sin(pe)
    slab[ROW_W1COS:ROW_W1COS + 32, 0:6] = W1k[:, 25:31]       # cos(pe)
    slab[ROW_W1VB:ROW_W1VB + 32, 12:15] = W1k[:, 16:19]       # raw viewdirs
    slab[ROW_W1VB:ROW_W1VB + 32, 15] = b1                     # bias via ones row

    # ---- layer-3
    slab[ROW_W2:ROW_W2 + 3, 0:32] = w2_t.T
    slab[ROW_B2:ROW_B2 + 3, 0] = b2
    return jnp.asarray(slab, jnp.float32)


# ---------------------------------------------------------------------------
# Pure-JAX reference mirroring the PyTorch module exactly
# ---------------------------------------------------------------------------
def reference_forward(params, omega, omega_la, omega_mu, x, view):
    n = x.shape[0]
    feat = x @ params['wg_t'] + params['bg']
    asg = feat.reshape(n, NUM_THETA, NUM_PHI, 4)
    a = asg[..., 0:2]
    la = jax.nn.softplus(asg[..., 2:3] - 1.0)
    mu = jax.nn.softplus(asg[..., 3:4] - 1.0)

    om = jnp.asarray(omega).reshape(1, NUM_THETA, NUM_PHI, 3)
    om_la = jnp.asarray(omega_la).reshape(1, NUM_THETA, NUM_PHI, 3)
    om_mu = jnp.asarray(omega_mu).reshape(1, NUM_THETA, NUM_PHI, 3)
    vo = view[:, None, None]
    smooth = jax.nn.relu((vo * om).sum(-1, keepdims=True))
    exp_in = (-la * ((om_la * vo).sum(-1, keepdims=True)) ** 2
              - mu * ((om_mu * vo).sum(-1, keepdims=True)) ** 2)
    cf = (a * smooth * jnp.exp(exp_in)).reshape(n, -1)      # (n, 16)

    freq = 2.0 ** jnp.arange(VIEW_PE, dtype=jnp.float32)
    pts = (view[..., None] * freq).reshape(n, -1)
    pe = jnp.concatenate([jnp.sin(pts), jnp.cos(pts)], axis=-1)

    mlp_in = jnp.concatenate([cf, view, pe], axis=-1)       # (n, 31)
    h = jax.nn.relu(mlp_in @ params['w1_t'] + params['b1'])
    return h @ params['w2_t'] + params['b2']


if __name__ == "__main__":
    key = jax.random.PRNGKey(0)
    k_x, k_v, k_n, k_p = jax.random.split(key, 4)

    N = 2048                                              # adaptive tiling -> 4 "parallel" steps
    x = jax.random.normal(k_x, (N, ASG_FEATURE), jnp.float32)
    view = jax.random.normal(k_v, (N, 3), jnp.float32)
    view = view / jnp.linalg.norm(view, axis=-1, keepdims=True)
    normal = jax.random.normal(k_n, (N, 3), jnp.float32)   # unused by the forward pass

    kg, k1, k2 = jax.random.split(k_p, 3)
    wg_t, bg = init_linear(kg, ASG_FEATURE, ASG_HIDDEN)    # gaussian_feature: Linear(12, 32)
    w1_t, b1 = init_linear(k1, IN_MLPC, HIDDEN)            # mlp layer1: Linear(31, 32)
    w2_t, _ = init_linear(k2, HIDDEN, 3)                   # mlp layer3: Linear(32, 3)
    b2 = jnp.zeros((3,), jnp.float32)                      # init.constant_(bias, 0)
    params = dict(wg_t=wg_t, bg=bg, w1_t=w1_t, b1=b1, w2_t=w2_t, b2=b2)

    omega, omega_la, omega_mu = init_predefined_omega(NUM_THETA, NUM_PHI)
    const_slab = build_packed_constants(params, omega, omega_la, omega_mu)

    out = specular_forward(x, view, normal, const_slab)
    out = jax.block_until_ready(out)

    ref = reference_forward(params, omega, omega_la, omega_mu, x, view)
    np.testing.assert_allclose(np.asarray(out), np.asarray(ref), rtol=2e-3, atol=2e-3)

    print("KERNEL_OK")
</pallas_src>

<mosaic_0001>
module attributes {stable_mosaic.version = 11 : i64} {
  func.func @specular_kernel(%arg0: i32, %arg1: memref<16x512xf32, #tpu.memory_space<vmem>>, %arg2: memref<240x32xf32, #tpu.memory_space<vmem>>, %arg3: memref<3x512xf32, #tpu.memory_space<vmem>>) attributes {dimension_semantics = [#tpu.dimension_semantics<parallel>], iteration_bounds = array<i64: 4>, scalar_prefetch = 0 : i64, scratch_operands = 0 : i64, tpu.core_type = #tpu.core_type<tc>, window_params = [{transform_indices = @transform_0, window_bounds = array<i64: 16, 512>}, {pipeline_mode = #tpu.pipeline_mode<synchronous>, transform_indices = @transform_1, window_bounds = array<i64: 240, 32>}, {transform_indices = @transform_2, window_bounds = array<i64: 3, 512>}]} {
    %c0 = arith.constant 0 : index
    %c0_0 = arith.constant 0 : index
    %0 = vector.load %arg1[%c0, %c0_0] : memref<16x512xf32, #tpu.memory_space<vmem>>, vector<16x512xf32>
    %c0_1 = arith.constant 0 : index
    %c0_2 = arith.constant 0 : index
    %1 = vector.load %arg2[%c0_1, %c0_2] : memref<240x32xf32, #tpu.memory_space<vmem>>, vector<64x16xf32>
    %c64 = arith.constant 64 : index
    %c0_3 = arith.constant 0 : index
    %2 = vector.load %arg2[%c64, %c0_3] : memref<240x32xf32, #tpu.memory_space<vmem>>, vector<32x8xf32>
    %c96 = arith.constant 96 : index
    %c0_4 = arith.constant 0 : index
    %3 = vector.load %arg2[%c96, %c0_4] : memref<240x32xf32, #tpu.memory_space<vmem>>, vector<32x8xf32>
    %c128 = arith.constant 128 : index
    %c0_5 = arith.constant 0 : index
    %4 = vector.load %arg2[%c128, %c0_5] : memref<240x32xf32, #tpu.memory_space<vmem>>, vector<32x8xf32>
    %c160 = arith.constant 160 : index
    %c0_6 = arith.constant 0 : index
    %5 = vector.load %arg2[%c160, %c0_6] : memref<240x32xf32, #tpu.memory_space<vmem>>, vector<32x8xf32>
    %c192 = arith.constant 192 : index
    %c0_7 = arith.constant 0 : index
    %6 = vector.load %arg2[%c192, %c0_7] : memref<240x32xf32, #tpu.memory_space<vmem>>, vector<32x16xf32>
    %c224 = arith.constant 224 : index
    %c0_8 = arith.constant 0 : index
    %7 = vector.load %arg2[%c224, %c0_8] : memref<240x32xf32, #tpu.memory_space<vmem>>, vector<3x32xf32>
    %c232 = arith.constant 232 : index
    %c0_9 = arith.constant 0 : index
    %8 = vector.load %arg2[%c232, %c0_9] : memref<240x32xf32, #tpu.memory_space<vmem>>, vector<3x1xf32>
    %cst = arith.constant dense<0.000000e+00> : vector<64x512xf32>
    %9 = tpu.matmul %1, %0, %cst {dimension_numbers = #tpu.dot_dimension_numbers<[1], [0], [0], [1], [0, 0, 1, 1], [], []>} : vector<64x16xf32>, vector<16x512xf32>, vector<64x512xf32> -> vector<64x512xf32>
    %10 = vector.extract_strided_slice %9 {offsets = [16, 0], sizes = [16, 512], strides = [1, 1]} : vector<64x512xf32> to vector<16x512xf32>
    %cst_10 = arith.constant 0.000000e+00 : f32
    %11 = vector.broadcast %cst_10 : f32 to vector<16x512xf32>
    %12 = arith.maximumf %10, %11 : vector<16x512xf32>
    %13 = vector.broadcast %cst_10 : f32 to vector<16x512xf32>
    %14 = arith.subf %10, %13 : vector<16x512xf32>
    %15 = arith.cmpf one, %14, %14 : vector<16x512xf32>
    %16 = vector.broadcast %cst_10 : f32 to vector<16x512xf32>
    %17 = arith.addf %10, %16 : vector<16x512xf32>
    %18 = math.absf %14 : vector<16x512xf32>
    %cst_11 = arith.constant 0.000000e+00 : f32
    %19 = vector.broadcast %cst_11 : f32 to vector<16x512xf32>
    %20 = arith.subf %19, %18 : vector<16x512xf32>
    %21 = math.exp %20 : vector<16x512xf32>
    %22 = math.log1p %21 : vector<16x512xf32>
    %23 = arith.addf %12, %22 : vector<16x512xf32>
    %24 = arith.select %15, %17, %23 : vector<16x512xi1>, vector<16x512xf32>
    %25 = vector.extract_strided_slice %9 {offsets = [32, 0], sizes = [8, 512], strides = [1, 1]} : vector<64x512xf32> to vector<8x512xf32>
    %cst_12 = arith.constant 0.000000e+00 : f32
    %26 = vector.broadcast %cst_12 : f32 to vector<8x512xf32>
    %27 = arith.maximumf %25, %26 : vector<8x512xf32>
    %28 = vector.extract_strided_slice %9 {offsets = [40, 0], sizes = [8, 512], strides = [1, 1]} : vector<64x512xf32> to vector<8x512xf32>
    %29 = vector.extract_strided_slice %9 {offsets = [48, 0], sizes = [8, 512], strides = [1, 1]} : vector<64x512xf32> to vector<8x512xf32>
    %30 = vector.extract_strided_slice %24 {offsets = [0, 0], sizes = [8, 512], strides = [1, 1]} : vector<16x512xf32> to vector<8x512xf32>
    %31 = arith.mulf %30, %28 : vector<8x512xf32>
    %32 = arith.mulf %31, %28 : vector<8x512xf32>
    %33 = vector.extract_strided_slice %24 {offsets = [8, 0], sizes = [8, 512], strides = [1, 1]} : vector<16x512xf32> to vector<8x512xf32>
    %34 = arith.mulf %33, %29 : vector<8x512xf32>
    %35 = arith.mulf %34, %29 : vector<8x512xf32>
    %36 = arith.addf %32, %35 : vector<8x512xf32>
    %cst_13 = arith.constant 0.000000e+00 : f32
    %37 = vector.broadcast %cst_13 : f32 to vector<8x512xf32>
    %38 = arith.subf %37, %36 : vector<8x512xf32>
    %39 = math.exp %38 : vector<8x512xf32>
    %40 = arith.mulf %27, %39 : vector<8x512xf32>
    %41 = vector.extract_strided_slice %9 {offsets = [0, 0], sizes = [8, 512], strides = [1, 1]} : vector<64x512xf32> to vector<8x512xf32>
    %42 = arith.mulf %41, %40 : vector<8x512xf32>
    %43 = vector.extract_strided_slice %9 {offsets = [8, 0], sizes = [8, 512], strides = [1, 1]} : vector<64x512xf32> to vector<8x512xf32>
    %44 = arith.mulf %43, %40 : vector<8x512xf32>
    %45 = vector.extract_strided_slice %9 {offsets = [56, 0], sizes = [8, 512], strides = [1, 1]} : vector<64x512xf32> to vector<8x512xf32>
    %46 = math.sin %45 : vector<8x512xf32>
    %47 = math.cos %45 : vector<8x512xf32>
    %cst_14 = arith.constant dense<0.000000e+00> : vector<32x512xf32>
    %48 = tpu.matmul %2, %42, %cst_14 {dimension_numbers = #tpu.dot_dimension_numbers<[1], [0], [0], [1], [0, 0, 1, 1], [], []>} : vector<32x8xf32>, vector<8x512xf32>, vector<32x512xf32> -> vector<32x512xf32>
    %cst_15 = arith.constant dense<0.000000e+00> : vector<32x512xf32>
    %49 = tpu.matmul %3, %44, %cst_15 {dimension_numbers = #tpu.dot_dimension_numbers<[1], [0], [0], [1], [0, 0, 1, 1], [], []>} : vector<32x8xf32>, vector<8x512xf32>, vector<32x512xf32> -> vector<32x512xf32>
    %50 = arith.addf %48, %49 : vector<32x512xf32>
    %cst_16 = arith.constant dense<0.000000e+00> : vector<32x512xf32>
    %51 = tpu.matmul %4, %46, %cst_16 {dimension_numbers = #tpu.dot_dimension_numbers<[1], [0], [0], [1], [0, 0, 1, 1], [], []>} : vector<32x8xf32>, vector<8x512xf32>, vector<32x512xf32> -> vector<32x512xf32>
    %52 = arith.addf %50, %51 : vector<32x512xf32>
    %cst_17 = arith.constant dense<0.000000e+00> : vector<32x512xf32>
    %53 = tpu.matmul %5, %47, %cst_17 {dimension_numbers = #tpu.dot_dimension_numbers<[1], [0], [0], [1], [0, 0, 1, 1], [], []>} : vector<32x8xf32>, vector<8x512xf32>, vector<32x512xf32> -> vector<32x512xf32>
    %54 = arith.addf %52, %53 : vector<32x512xf32>
    %cst_18 = arith.constant dense<0.000000e+00> : vector<32x512xf32>
    %55 = tpu.matmul %6, %0, %cst_18 {dimension_numbers = #tpu.dot_dimension_numbers<[1], [0], [0], [1], [0, 0, 1, 1], [], []>} : vector<32x16xf32>, vector<16x512xf32>, vector<32x512xf32> -> vector<32x512xf32>
    %56 = arith.addf %54, %55 : vector<32x512xf32>
    %cst_19 = arith.constant 0.000000e+00 : f32
    %57 = vector.broadcast %cst_19 : f32 to vector<32x512xf32>
    %58 = arith.maximumf %56, %57 : vector<32x512xf32>
    %cst_20 = arith.constant dense<0.000000e+00> : vector<3x512xf32>
    %59 = tpu.matmul %7, %58, %cst_20 {dimension_numbers = #tpu.dot_dimension_numbers<[1], [0], [0], [1], [0, 0, 1, 1], [], []>} : vector<3x32xf32>, vector<32x512xf32>, vector<3x512xf32> -> vector<3x512xf32>
    %60 = vector.broadcast %8 : vector<3x1xf32> to vector<3x512xf32>
    %61 = arith.addf %59, %60 : vector<3x512xf32>
    %c0_21 = arith.constant 0 : index
    %c0_22 = arith.constant 0 : index
    %62 = vector.load %arg3[%c0_21, %c0_22] : memref<3x512xf32, #tpu.memory_space<vmem>>, vector<3x512xf32>
    tpu.vector_store %arg3[%c0_21, %c0_22], %61 {strides = array<i32>} : memref<3x512xf32, #tpu.memory_space<vmem>>, vector<3x512xf32>,
    return
  }
  func.func @transform_0(%arg0: i32) -> (i32, i32) {
    %c0_i32 = arith.constant 0 : i32
    %c0_i32_0 = arith.constant 0 : i32
    return %c0_i32, %arg0 : i32, i32
  }
  func.func @transform_1(%arg0: i32) -> (i32, i32) {
    %c0_i32 = arith.constant 0 : i32
    %c0_i32_0 = arith.constant 0 : i32
    %c0_i32_1 = arith.constant 0 : i32
    return %c0_i32, %c0_i32_0 : i32, i32
  }
  func.func @transform_2(%arg0: i32) -> (i32, i32) {
    %c0_i32 = arith.constant 0 : i32
    %c0_i32_0 = arith.constant 0 : i32
    return %c0_i32, %arg0 : i32, i32
  }
}

</mosaic_0001>

<llo_original>
// kernel: tpu_custom_call.1
$region0: #{tpu_custom_call.1}
  #allocation0 [shape = 'u32[]', space=smem, size = 0x4, offset = 0x4, fixed_abs, tag = 'smem constant byte address 0x4 - core index']
  #allocation1 [shape = 'u32[144,128]{1,0:T(1,128)}', space=vmem, size = 0x12000, scoped, tag = 'internal scratch']
  %s0 = inlined_call_operand.vmem [shape: f32[16,2048], index: 0, kind: input, shape index: {}]
  %s1 = inlined_call_operand.vmem [shape: f32[240,32], index: 1, kind: input, shape index: {}]
  %s2 = inlined_call_operand.hbm [shape: f32[3,2048], index: 2, kind: output, shape index: {}]
  %s3 = sld [smem:[#allocation0]]
  $region64: #{tpu_custom_call.1} parent=0
    _
  %s5 = ssub.s32 1, %s3
  %s6 = scalar_select 0, %s5, %s3
  $region1: #{tpu_custom_call.1} parent=0
    #allocation2 [shape = 'u8[65536]{0}', space=vmem, size = 0x10000, scoped, tag = 'input window, operand 0']
    #allocation3 [shape = 'u8[16384]{0}', space=vmem, size = 0x4000, scoped, tag = 'output window, operand 0']
    #allocation4 [shape = 's32[2]{0}', space=sflag, size = 0x8, scoped, tag = 'scoped memory for tpu_custom_call.1']
    %7 = vsyncpa [#allocation4], 0
    %s8 = scalar_lea.sflag [#allocation4], 1
    %9 = vsyncpa %s8, 0
    loop: start=0, step=1, limit=6
    $region2: #{tpu_custom_call.1} parent=1 // loop_pre_header
      _
    $region3: #{tpu_custom_call.1} parent=1 // loop_header
      %s11 = sphi 0, %s15
      %p12 = scmp.ge.s32.totalorder %s11, 6
      %s21 = sphi 0, %s23
      %s24 = sphi 0, %s21
      %s25 = sphi 0, %s24
      %s41 = sphi 0, %s25
      %s45 = sphi 0, %s45
      %s47 = sphi 0, %s45
      %s48 = sphi 0, %s47
      %s62 = sphi 0, %s48
      %s68 = sphi 0, %s70
      %s71 = sphi 0, %s68
      %s72 = sphi 0, %s71
      %s88 = sphi 0, %s72
    $region4: #{tpu_custom_call.1} parent=1 // loop_header_branch
      %14 = sbr.rel (%p12) target = $region8
    $region5: #{tpu_custom_call.1} parent=1 // loop_body
      %s16 = ssub.s32 %s11, 1
      %s17 = ssub.s32 %s11, 2
      %s18 = sadd.s32 %s11, 1
      %s19 = ssub.s32 %s11, %s18
      %p20 = scmp.eq.s32.totalorder %s19, 0
      %s22 = sadd.s32 %s21, 1
      %s23 = scalar_select %p20, %s21, %s22
      %p26 = pneg %p20
      %p27 = scmp.eq.s32.totalorder %s11, 3
      %p28 = por %p26, %p27
      %p29 = scmp.ne.s32.totalorder %s21, %s24
      %p30 = scmp.eq.s32.totalorder %s11, 0
      %p31 = por %p29, %p30
      %p32 = scmp.ne.s32.totalorder %s21, %s24
      %p33 = scmp.eq.s32.totalorder %s16, 3
      %p34 = por %p32, %p33
      %p35 = scmp.ne.s32.totalorder %s24, %s25
      %p36 = scmp.eq.s32.totalorder %s16, 0
      %p37 = por %p35, %p36
      %p38 = scmp.ne.s32.totalorder %s24, %s25
      %p39 = scmp.eq.s32.totalorder %s17, 3
      %p40 = por %p38, %p39
      %p42 = scmp.ne.s32.totalorder %s25, %s41
      %p43 = scmp.eq.s32.totalorder %s17, 0
      %p44 = por %p42, %p43
      %s46 = sadd.s32 %s45, 1
      %p49 = scmp.eq.s32.totalorder %s11, 3
      %p50 = scmp.ne.s32.totalorder %s45, %s47
      %p51 = scmp.eq.s32.totalorder %s11, 0
      %p52 = por %p50, %p51
      %p53 = scmp.ne.s32.totalorder %s45, %s47
      %p54 = scmp.eq.s32.totalorder %s16, 3
      %p55 = por %p53, %p54
      %p56 = scmp.ne.s32.totalorder %s47, %s48
      %p57 = scmp.eq.s32.totalorder %s16, 0
      %p58 = por %p56, %p57
      %p59 = scmp.ne.s32.totalorder %s47, %s48
      %p60 = scmp.eq.s32.totalorder %s17, 3
      %p61 = por %p59, %p60
      %p63 = scmp.ne.s32.totalorder %s48, %s62
      %p64 = scmp.eq.s32.totalorder %s17, 0
      %p65 = por %p63, %p64
      %s66 = ssub.s32 %s11, %s18
      %p67 = scmp.eq.s32.totalorder %s66, 0
      %s69 = sadd.s32 %s68, 1
      %s70 = scalar_select %p67, %s68, %s69
      %p73 = pneg %p67
      %p74 = scmp.eq.s32.totalorder %s11, 3
      %p75 = por %p73, %p74
      %p76 = scmp.ne.s32.totalorder %s68, %s71
      %p77 = scmp.eq.s32.totalorder %s11, 0
      %p78 = por %p76, %p77
      %p79 = scmp.ne.s32.totalorder %s68, %s71
      %p80 = scmp.eq.s32.totalorder %s16, 3
      %p81 = por %p79, %p80
      %p82 = scmp.ne.s32.totalorder %s71, %s72
      %p83 = scmp.eq.s32.totalorder %s16, 0
      %p84 = por %p82, %p83
      %p85 = scmp.ne.s32.totalorder %s71, %s72
      %p86 = scmp.eq.s32.totalorder %s17, 3
      %p87 = por %p85, %p86
      %p89 = scmp.ne.s32.totalorder %s72, %s88
      %p90 = scmp.eq.s32.totalorder %s17, 0
      %p91 = por %p89, %p90
      %p92 = scmp.le.s32.totalorder 1, %s11
      %p93 = scmp.lt.s32.totalorder %s11, 5
      %p94 = pnand %p92, %p93
      %p95 = pneg %p94
      // Predicated region
      $region9: #{tpu_custom_call.1} parent=5 // pred_check
        _
      $region10: #{tpu_custom_call.1} parent=5 // pred_check_branch
        %97 = sbr.rel (%p94) target = $region12
      $region11: #{tpu_custom_call.1} parent=5 // pred_region
        %s98 = ssub.s32 %s11, 1
        // Predicated region
        $region13: #{tpu_custom_call.1} parent=11 // pred_check
          %p99 = pneg %p58
        $region14: #{tpu_custom_call.1} parent=11 // pred_check_branch
          %101 = sbr.rel (%p99) target = $region16
        $region15: #{tpu_custom_call.1} parent=11 // pred_region
          _
        $region16: #{tpu_custom_call.1} parent=11 // pred_fallthru
          _
      $region12: #{tpu_custom_call.1} parent=5 // pred_fallthru
        _
      %p102 = scmp.lt.s32.totalorder %s11, 4
      // Predicated region
      $region17: #{tpu_custom_call.1} parent=5 // pred_check
        %p103 = pneg %p102
      $region18: #{tpu_custom_call.1} parent=5 // pred_check_branch
        %105 = sbr.rel (%p103) target = $region20
      $region19: #{tpu_custom_call.1} parent=5 // pred_region
        // Predicated region
        $region21: #{tpu_custom_call.1} parent=19 // pred_check
          %p106 = pneg %p31
        $region22: #{tpu_custom_call.1} parent=19 // pred_check_branch
          %108 = sbr.rel (%p106) target = $region24
        $region23: #{tpu_custom_call.1} parent=19 // pred_region
          %s109 = sand.u32 %s21, 1
          %s110 = sand.u32 %s21, 1
          %s111 = smul.addr %s110, 64
          %s112 = scalar_lea.vmem [#allocation2], %s111
          %s113 = smul.u32 4, %s11
          %s114 = smul.addr %s113, 8
          %s115 = scalar_lea.vmem %s0, %s114
          // Predicated region
          $region25: #{tpu_custom_call.1} parent=23 // pred_check
            _
          $region26: #{tpu_custom_call.1} parent=23 // pred_check_branch
            %117 = sbr.rel (0) target = $region28
          $region27: #{tpu_custom_call.1} parent=23 // pred_region
            // Predicated region
            $region29: #{tpu_custom_call.1} parent=27 // pred_check
              _
            $region30: #{tpu_custom_call.1} parent=27 // pred_check_branch
              %119 = sbr.rel (0) target = $region32
            $region31: #{tpu_custom_call.1} parent=27 // pred_region
              loop: start=0, step=1, limit=1
              $region33: #{tpu_custom_call.1} parent=31 // loop_pre_header
                _
              $region34: #{tpu_custom_call.1} parent=31 // loop_header
                %s121 = sphi 0, %s125
                %p122 = scmp.ge.s32.totalorder %s121, 1
                %s126 = sphi %s115, %s115
                %s127 = sphi %s112, %s112
              $region35: #{tpu_custom_call.1} parent=31 // loop_header_branch
                %124 = sbr.rel (%p122) target = $region39
              $region36: #{tpu_custom_call.1} parent=31 // loop_body
                %v128 = vld [vmem:[%s126] sm:$0xff]
                %129 = vst [vmem:[%s127] sm:$0xff] %v128
                %v130 = vld [vmem:[%s126 + $0x8] sm:$0xff]
                %131 = vst [vmem:[%s127 + $0x8] sm:$0xff] %v130
                %v132 = vld [vmem:[%s126 + $0x10] sm:$0xff]
                %133 = vst [vmem:[%s127 + $0x10] sm:$0xff] %v132
                %v134 = vld [vmem:[%s126 + $0x18] sm:$0xff]
                %135 = vst [vmem:[%s127 + $0x18] sm:$0xff] %v134
                %v136 = vld [vmem:[%s126 + $0x80] sm:$0xff]
                %137 = vst [vmem:[%s127 + $0x20] sm:$0xff] %v136
                %v138 = vld [vmem:[%s126 + $0x88] sm:$0xff]
                %139 = vst [vmem:[%s127 + $0x28] sm:$0xff] %v138
                %v140 = vld [vmem:[%s126 + $0x90] sm:$0xff]
                %141 = vst [vmem:[%s127 + $0x30] sm:$0xff] %v140
                %v142 = vld [vmem:[%s126 + $0x98] sm:$0xff]
                %143 = vst [vmem:[%s127 + $0x38] sm:$0xff] %v142
              $region37: #{tpu_custom_call.1} parent=31 // loop_footer
                %s125 = sadd.s32 1, %s121
              $region38: #{tpu_custom_call.1} parent=31 // loop_footer_branch
                %120 = sbr.rel target = $region34
              $region39: #{tpu_custom_call.1} parent=31 // loop_exit
                _
            $region32: #{tpu_custom_call.1} parent=27 // pred_fallthru
              _
            // Predicated region
            $region40: #{tpu_custom_call.1} parent=27 // pred_check
              _
            $region41: #{tpu_custom_call.1} parent=27 // pred_check_branch
              %145 = sbr.rel target = $region43
            $region42: #{tpu_custom_call.1} parent=27 // pred_region
              _
            $region43: #{tpu_custom_call.1} parent=27 // pred_fallthru
              _
          $region28: #{tpu_custom_call.1} parent=23 // pred_fallthru
            _
          %146 = vnop
        $region24: #{tpu_custom_call.1} parent=19 // pred_fallthru
          _
      $region20: #{tpu_custom_call.1} parent=5 // pred_fallthru
        _
      %p147 = scmp.le.s32.totalorder 1, %s11
      %p148 = scmp.lt.s32.totalorder %s11, 5
      %p149 = pnand %p147, %p148
      %p150 = pneg %p149
      // Predicated region
      $region44: #{tpu_custom_call.1} parent=5 // pred_check
        _
      $region45: #{tpu_custom_call.1} parent=5 // pred_check_branch
        %152 = sbr.rel (%p149) target = $region47
      $region46: #{tpu_custom_call.1} parent=5 // pred_region
        %s153 = ssub.s32 %s11, 1
        %s154 = sand.u32 %s24, 1
        %s155 = sand.u32 %s24, 1
        %s156 = smul.addr %s155, 64
        %s157 = scalar_lea.vmem [#allocation2], %s156
        // Predicated region
        $region48: #{tpu_custom_call.1} parent=46 // pred_check
          %p158 = pneg %p37
        $region49: #{tpu_custom_call.1} parent=46 // pred_check_branch
          %160 = sbr.rel (%p158) target = $region51
        $region50: #{tpu_custom_call.1} parent=46 // pred_region
          _
        $region51: #{tpu_custom_call.1} parent=46 // pred_fallthru
          _
        %s161 = sand.u32 %s24, 1
        %s162 = sand.u32 %s24, 1
        %s163 = smul.addr %s162, 64
        %s164 = scalar_lea.vmem [#allocation2], %s163
        %p165 = pneg %p37
        %p166 = pneg %p34
        %p167 = pneg %p58
        %p168 = pneg %p55
        %p169 = pneg %p84
        %p170 = pneg %p81
        %s171 = sand.u32 %s71, 1
        %s172 = scalar_lea.sflag [#allocation4], %s171
        %s173 = sand.u32 %s71, 1
        %s174 = smul.addr %s173, 16
        %s175 = scalar_lea.vmem [#allocation3], %s174
        %s176 = smul.u32 4, %s16
        %s177 = smul.u32 4, %s16
        %v178 = vld [vmem:[%s157] sm:$0xff]
        %v179 = vld [vmem:[%s157 + $0x8] sm:$0xff]
        %v180 = vld [vmem:[%s157 + $0x10] sm:$0xff]
        %v181 = vld [vmem:[%s157 + $0x18] sm:$0xff]
        %v182 = vld [vmem:[%s157 + $0x20] sm:$0xff]
        %v183 = vld [vmem:[%s157 + $0x28] sm:$0xff]
        %v184 = vld [vmem:[%s157 + $0x30] sm:$0xff]
        %v185 = vld [vmem:[%s157 + $0x38] sm:$0xff]
        %v186 = vld [vmem:[%s1] sm:$0xff]
        %v187 = vld [vmem:[%s1 + $0x8] sm:$0xff]
        %v188 = vld [vmem:[%s1 + $0x10] sm:$0xff]
        %v189 = vld [vmem:[%s1 + $0x18] sm:$0xff]
        %v190 = vld [vmem:[%s1 + $0x20] sm:$0xff]
        %v191 = vld [vmem:[%s1 + $0x28] sm:$0xff]
        %v192 = vld [vmem:[%s1 + $0x30] sm:$0xff]
        %v193 = vld [vmem:[%s1 + $0x38] sm:$0xff]
        %v194 = vld [vmem:[%s1 + $0x40] sm:$0xff]
        %v195 = vld [vmem:[%s1 + $0x48] sm:$0xff]
        %v196 = vld [vmem:[%s1 + $0x50] sm:$0xff]
        %v197 = vld [vmem:[%s1 + $0x58] sm:$0xff]
        %v198 = vld [vmem:[%s1 + $0x60] sm:$0xff]
        %v199 = vld [vmem:[%s1 + $0x68] sm:$0xff]
        %v200 = vld [vmem:[%s1 + $0x70] sm:$0xff]
        %v201 = vld [vmem:[%s1 + $0x78] sm:$0xff]
        %v202 = vld [vmem:[%s1 + $0x80] sm:$0xff]
        %v203 = vld [vmem:[%s1 + $0x88] sm:$0xff]
        %v204 = vld [vmem:[%s1 + $0x90] sm:$0xff]
        %v205 = vld [vmem:[%s1 + $0x98] sm:$0xff]
        %v206 = vld [vmem:[%s1 + $0xa0] sm:$0xff]
        %v207 = vld [vmem:[%s1 + $0xa8] sm:$0xff]
        %v208 = vld [vmem:[%s1 + $0xb0] sm:$0xff]
        %v209 = vld [vmem:[%s1 + $0xb8] sm:$0xff]
        %v210 = vld [vmem:[%s1 + $0xc0] sm:$0xff]
        %v211 = vld [vmem:[%s1 + $0xc8] sm:$0xff]
        %v212 = vld [vmem:[%s1 + $0xd0] sm:$0xff]
        %v213 = vld [vmem:[%s1 + $0xd8] sm:$0xff]
        %v214 = vld [vmem:[%s1 + $0xe0] sm:$0x7]
        %v215 = vld [vmem:[%s1 + $0xe8] sm:$0x7]
        %vm216 = vcmask 130048
        %v218 = vsel %vm216, %v186, 0
        %v221 = vsel %vm216, %v187, 0
        %v224 = vsel %vm216, %v188, 0
        %v227 = vsel %vm216, %v189, 0
        %v230 = vsel %vm216, %v190, 0
        %v233 = vsel %vm216, %v191, 0
        %v236 = vsel %vm216, %v192, 0
        %v239 = vsel %vm216, %v193, 0
        %241 = vmatprep.subr.mxu0 0.0
        %242 = vmatpush1.msra.mxu0 0.0
        %243 = vmatprep.subr.mxu0 0.0
        %244 = vmatpush1.msra.mxu0 0.0
        %245 = vmatprep.subr.mxu0 0.0
        %246 = vmatpush1.msra.mxu0 0.0
        %247 = vmatprep.subr.mxu0 0.0
        %248 = vmatpush1.msra.mxu0 0.0
        %249 = vmatprep.subr.mxu0 0.0
        %250 = vmatpush1.msra.mxu0 0.0
        %251 = vmatprep.subr.mxu0 0.0
        %252 = vmatpush1.msra.mxu0 0.0
        %253 = vmatprep.subr.mxu0 0.0
        %254 = vmatpush1.msra.mxu0 0.0
        %255 = vmatprep.subr.mxu0 0.0
        %256 = vmatpush1.msra.mxu0 0.0
        %257 = vmatprep.subr.mxu0 0.0
        %258 = vmatpush1.msra.mxu0 0.0
        %259 = vmatprep.subr.mxu0 0.0
        %260 = vmatpush1.msra.mxu0 0.0
        %261 = vmatprep.subr.mxu0 0.0
        %262 = vmatpush1.msra.mxu0 0.0
        %263 = vmatprep.subr.mxu0 0.0
        %264 = vmatpush1.msra.mxu0 0.0
        %265 = vmatprep.subr.mxu0 0.0
        %266 = vmatpush1.msra.mxu0 0.0
        %267 = vmatprep.subr.mxu0 0.0
        %268 = vmatpush1.msra.mxu0 0.0
        %269 = vmatprep.subr.mxu0 %v183
        %270 = vmatpush1.msra.mxu0 %v182
        %271 = vmatprep.subr.mxu0 %v179
        %272 = vmatpush1.msra.mxu0 %v178
        %273 = vmatprep.subr.mxu0 0.0
        %274 = vmatpush2.msra.mxu0 0.0
        %275 = vmatprep.subr.mxu0 0.0
        %276 = vmatpush2.msra.mxu0 0.0
        %277 = vmatprep.subr.mxu0 0.0
        %278 = vmatpush2.msra.mxu0 0.0
        %279 = vmatprep.subr.mxu0 0.0
        %280 = vmatpush2.msra.mxu0 0.0
        %281 = vmatprep.subr.mxu0 0.0
        %282 = vmatpush2.msra.mxu0 0.0
        %283 = vmatprep.subr.mxu0 0.0
        %284 = vmatpush2.msra.mxu0 0.0
        %285 = vmatprep.subr.mxu0 0.0
        %286 = vmatpush2.msra.mxu0 0.0
        %287 = vmatprep.subr.mxu0 0.0
        %288 = vmatpush2.msra.mxu0 0.0
        %289 = vmatprep.subr.mxu0 0.0
        %290 = vmatpush2.msra.mxu0 0.0
        %291 = vmatprep.subr.mxu0 0.0
        %292 = vmatpush2.msra.mxu0 0.0
        %293 = vmatprep.subr.mxu0 0.0
        %294 = vmatpush2.msra.mxu0 0.0
        %295 = vmatprep.subr.mxu0 0.0
        %296 = vmatpush2.msra.mxu0 0.0
        %297 = vmatprep.subr.mxu0 0.0
        %298 = vmatpush2.msra.mxu0 0.0
        %299 = vmatprep.subr.mxu0 0.0
        %300 = vmatpush2.msra.mxu0 0.0
        %301 = vmatprep.subr.mxu0 0.0
        %302 = vmatpush2.msra.mxu0 0.0
        %303 = vmatprep.subr.mxu0 0.0
        %304 = vmatpush2.msra.mxu0 0.0
        %305 = vmatprep.mubr.f32.mxu0 0.0
        %306 = vmatmul.mubr.f32.gmra.mxu0 %v218
        %v307 = vpop.f32.mrf.mxu0
        %v308 = vadd.f32 0.0, %v307
        %v309 = vpop.f32.mrf.mxu0
        %v310 = vadd.f32 0.0, %v309
        %311 = vmatprep.mubr.f32.mxu0 0.0
        %312 = vmatmul.mubr.f32.gmra.mxu0 %v221
        %v313 = vpop.f32.mrf.mxu0
        %v314 = vadd.f32 0.0, %v313
        %v315 = vpop.f32.mrf.mxu0
        %v316 = vadd.f32 0.0, %v315
        %317 = vmatprep.mubr.f32.mxu0 0.0
        %318 = vmatmul.mubr.f32.gmra.mxu0 %v224
        %v319 = vpop.f32.mrf.mxu0
        %v320 = vadd.f32 0.0, %v319
        %v321 = vpop.f32.mrf.mxu0
        %v322 = vadd.f32 0.0, %v321
        %323 = vmatprep.mubr.f32.mxu0 0.0
        %324 = vmatmul.mubr.f32.gmra.mxu0 %v227
        %v325 = vpop.f32.mrf.mxu0
        %v326 = vadd.f32 0.0, %v325
        %v327 = vpop.f32.mrf.mxu0
        %v328 = vadd.f32 0.0, %v327
        %329 = vmatprep.mubr.f32.mxu0 0.0
        %330 = vmatmul.mubr.f32.gmra.mxu0 %v230
        %v331 = vpop.f32.mrf.mxu0
        %v332 = vadd.f32 0.0, %v331
        %v333 = vpop.f32.mrf.mxu0
        %v334 = vadd.f32 0.0, %v333
        %335 = vmatprep.mubr.f32.mxu0 0.0
        %336 = vmatmul.mubr.f32.gmra.mxu0 %v233
        %v337 = vpop.f32.mrf.mxu0
        %v338 = vadd.f32 0.0, %v337
        %v339 = vpop.f32.mrf.mxu0
        %v340 = vadd.f32 0.0, %v339
        %341 = vmatprep.mubr.f32.mxu0 0.0
        %342 = vmatmul.mubr.f32.gmra.mxu0 %v236
        %v343 = vpop.f32.mrf.mxu0
        %v344 = vadd.f32 0.0, %v343
        %v345 = vpop.f32.mrf.mxu0
        %v346 = vadd.f32 0.0, %v345
        %347 = vmatprep.mubr.f32.mxu0 0.0
        %348 = vmatmul.mubr.f32.gmra.mxu0 %v239
        %v349 = vpop.f32.mrf.mxu0
        %v350 = vadd.f32 0.0, %v349
        %v351 = vpop.f32.mrf.mxu0
        %v352 = vadd.f32 0.0, %v351
        %353 = vdwg.mxu0
        %354 = vmatprep.subr.mxu0 0.0
        %355 = vmatpush1.msra.mxu0 0.0
        %356 = vmatprep.subr.mxu0 0.0
        %357 = vmatpush1.msra.mxu0 0.0
        %358 = vmatprep.subr.mxu0 0.0
        %359 = vmatpush1.msra.mxu0 0.0
        %360 = vmatprep.subr.mxu0 0.0
        %361 = vmatpush1.msra.mxu0 0.0
        %362 = vmatprep.subr.mxu0 0.0
        %363 = vmatpush1.msra.mxu0 0.0
        %364 = vmatprep.subr.mxu0 0.0
        %365 = vmatpush1.msra.mxu0 0.0
        %366 = vmatprep.subr.mxu0 0.0
        %367 = vmatpush1.msra.mxu0 0.0
        %368 = vmatprep.subr.mxu0 0.0
        %369 = vmatpush1.msra.mxu0 0.0
        %370 = vmatprep.subr.mxu0 0.0
        %371 = vmatpush1.msra.mxu0 0.0
        %372 = vmatprep.subr.mxu0 0.0
        %373 = vmatpush1.msra.mxu0 0.0
        %374 = vmatprep.subr.mxu0 0.0
        %375 = vmatpush1.msra.mxu0 0.0
        %376 = vmatprep.subr.mxu0 0.0
        %377 = vmatpush1.msra.mxu0 0.0
        %378 = vmatprep.subr.mxu0 0.0
        %379 = vmatpush1.msra.mxu0 0.0
        %380 = vmatprep.subr.mxu0 0.0
        %381 = vmatpush1.msra.mxu0 0.0
        %382 = vmatprep.subr.mxu0 %v185
        %383 = vmatpush1.msra.mxu0 %v184
        %384 = vmatprep.subr.mxu0 %v181
        %385 = vmatpush1.msra.mxu0 %v180
        %386 = vmatprep.subr.mxu0 0.0
        %387 = vmatpush2.msra.mxu0 0.0
        %388 = vmatprep.subr.mxu0 0.0
        %389 = vmatpush2.msra.mxu0 0.0
        %390 = vmatprep.subr.mxu0 0.0
        %391 = vmatpush2.msra.mxu0 0.0
        %392 = vmatprep.subr.mxu0 0.0
        %393 = vmatpush2.msra.mxu0 0.0
        %394 = vmatprep.subr.mxu0 0.0
        %395 = vmatpush2.msra.mxu0 0.0
        %396 = vmatprep.subr.mxu0 0.0
        %397 = vmatpush2.msra.mxu0 0.0
        %398 = vmatprep.subr.mxu0 0.0
        %399 = vmatpush2.msra.mxu0 0.0
        %400 = vmatprep.subr.mxu0 0.0
        %401 = vmatpush2.msra.mxu0 0.0
        %402 = vmatprep.subr.mxu0 0.0
        %403 = vmatpush2.msra.mxu0 0.0
        %404 = vmatprep.subr.mxu0 0.0
        %405 = vmatpush2.msra.mxu0 0.0
        %406 = vmatprep.subr.mxu0 0.0
        %407 = vmatpush2.msra.mxu0 0.0
        %408 = vmatprep.subr.mxu0 0.0
        %409 = vmatpush2.msra.mxu0 0.0
        %410 = vmatprep.subr.mxu0 0.0
        %411 = vmatpush2.msra.mxu0 0.0
        %412 = vmatprep.subr.mxu0 0.0
        %413 = vmatpush2.msra.mxu0 0.0
        %414 = vmatprep.subr.mxu0 0.0
        %415 = vmatpush2.msra.mxu0 0.0
        %416 = vmatprep.subr.mxu0 0.0
        %417 = vmatpush2.msra.mxu0 0.0
        %418 = vmatprep.mubr.f32.mxu0 0.0
        %419 = vmatmul.mubr.f32.gmra.mxu0 %v218
        %v420 = vpop.f32.mrf.mxu0
        %v421 = vadd.f32 0.0, %v420
        %v422 = vpop.f32.mrf.mxu0
        %v423 = vadd.f32 0.0, %v422
        %424 = vmatprep.mubr.f32.mxu0 0.0
        %425 = vmatmul.mubr.f32.gmra.mxu0 %v221
        %v426 = vpop.f32.mrf.mxu0
        %v427 = vadd.f32 0.0, %v426
        %v428 = vpop.f32.mrf.mxu0
        %v429 = vadd.f32 0.0, %v428
        %430 = vmatprep.mubr.f32.mxu0 0.0
        %431 = vmatmul.mubr.f32.gmra.mxu0 %v224
        %v432 = vpop.f32.mrf.mxu0
        %v433 = vadd.f32 0.0, %v432
        %v434 = vpop.f32.mrf.mxu0
        %v435 = vadd.f32 0.0, %v434
        %436 = vmatprep.mubr.f32.mxu0 0.0
        %437 = vmatmul.mubr.f32.gmra.mxu0 %v227
        %v438 = vpop.f32.mrf.mxu0
        %v439 = vadd.f32 0.0, %v438
        %v440 = vpop.f32.mrf.mxu0
        %v441 = vadd.f32 0.0, %v440
        %442 = vmatprep.mubr.f32.mxu0 0.0
        %443 = vmatmul.mubr.f32.gmra.mxu0 %v230
        %v444 = vpop.f32.mrf.mxu0
        %v445 = vadd.f32 0.0, %v444
        %v446 = vpop.f32.mrf.mxu0
        %v447 = vadd.f32 0.0, %v446
        %448 = vmatprep.mubr.f32.mxu0 0.0
        %449 = vmatmul.mubr.f32.gmra.mxu0 %v233
        %v450 = vpop.f32.mrf.mxu0
        %v451 = vadd.f32 0.0, %v450
        %v452 = vpop.f32.mrf.mxu0
        %v453 = vadd.f32 0.0, %v452
        %454 = vmatprep.mubr.f32.mxu0 0.0
        %455 = vmatmul.mubr.f32.gmra.mxu0 %v236
        %v456 = vpop.f32.mrf.mxu0
        %v457 = vadd.f32 0.0, %v456
        %v458 = vpop.f32.mrf.mxu0
        %v459 = vadd.f32 0.0, %v458
        %460 = vmatprep.mubr.f32.mxu0 0.0
        %461 = vmatmul.mubr.f32.gmra.mxu0 %v239
        %v462 = vpop.f32.mrf.mxu0
        %v463 = vadd.f32 0.0, %v462
        %v464 = vpop.f32.mrf.mxu0
        %v465 = vadd.f32 0.0, %v464
        %466 = vdwg.mxu0
        %v467 = vmax.f32 %v320, 0.0
        %v468 = vmax.f32 %v322, 0.0
        %v469 = vmax.f32 %v433, 0.0
        %v470 = vmax.f32 %v435, 0.0
        %v471 = vmax.f32 %v326, 0.0
        %v472 = vmax.f32 %v328, 0.0
        %v473 = vmax.f32 %v439, 0.0
        %v474 = vmax.f32 %v441, 0.0
        %vm475 = vcmp.ne.f32.partialorder %v320, %v320
        %vm476 = vcmp.ne.f32.partialorder %v322, %v322
        %vm477 = vcmp.ne.f32.partialorder %v433, %v433
        %vm478 = vcmp.ne.f32.partialorder %v435, %v435
        %vm479 = vcmp.ne.f32.partialorder %v326, %v326
        %vm480 = vcmp.ne.f32.partialorder %v328, %v328
        %vm481 = vcmp.ne.f32.partialorder %v439, %v439
        %vm482 = vcmp.ne.f32.partialorder %v441, %v441
        %v483 = vadd.f32 %v320, 0.0
        %v484 = vadd.f32 %v322, 0.0
        %v485 = vadd.f32 %v433, 0.0
        %v486 = vadd.f32 %v435, 0.0
        %v487 = vadd.f32 %v326, 0.0
        %v488 = vadd.f32 %v328, 0.0
        %v489 = vadd.f32 %v439, 0.0
        %v490 = vadd.f32 %v441, 0.0
        %v491 = vand.u32 2147483647, %v320
        %v492 = vand.u32 2147483647, %v322
        %v493 = vand.u32 2147483647, %v433
        %v494 = vand.u32 2147483647, %v435
        %v495 = vand.u32 2147483647, %v326
        %v496 = vand.u32 2147483647, %v328
        %v497 = vand.u32 2147483647, %v439
        %v498 = vand.u32 2147483647, %v441
        %v499 = vsub.f32 0.0, %v491
        %v500 = vsub.f32 0.0, %v492
        %v501 = vsub.f32 0.0, %v493
        %v502 = vsub.f32 0.0, %v494
        %v503 = vsub.f32 0.0, %v495
        %v504 = vsub.f32 0.0, %v496
        %v505 = vsub.f32 0.0, %v497
        %v506 = vsub.f32 0.0, %v498
        %v507 = vmul.f32 %v499, 1.442695
        %v508 = vpow.pop %v507
        %v509 = vmul.f32 %v500, 1.442695
        %v510 = vpow.pop %v509
        %v511 = vmul.f32 %v501, 1.442695
        %v512 = vpow.pop %v511
        %v513 = vmul.f32 %v502, 1.442695
        %v514 = vpow.pop %v513
        %v515 = vmul.f32 %v503, 1.442695
        %v516 = vpow.pop %v515
        %v517 = vmul.f32 %v504, 1.442695
        %v518 = vpow.pop %v517
        %v519 = vmul.f32 %v505, 1.442695
        %v520 = vpow.pop %v519
        %v521 = vmul.f32 %v506, 1.442695
        %v522 = vpow.pop %v521
        %v523 = vadd.f32 %v508, 1.0
        %v524 = vlog2.pop %v523
        %v525 = vmul.f32 %v524, 0.6931472
        %v526 = vmul.f32 -0.5, %v508
        %v527 = vadd.f32 %v526, 1.0
        %v528 = vmul.f32 %v527, %v508
        %v529 = vand.u32 2147483647, %v508
        %vm530 = vcmp.lt.f32.partialorder %v529, 0.0004427343
        %v531 = vsel %vm530, %v528, %v525
        %v532 = vadd.f32 %v510, 1.0
        %v533 = vlog2.pop %v532
        %v534 = vmul.f32 %v533, 0.6931472
        %v535 = vmul.f32 -0.5, %v510
        %v536 = vadd.f32 %v535, 1.0
        %v537 = vmul.f32 %v536, %v510
        %v538 = vand.u32 2147483647, %v510
        %vm539 = vcmp.lt.f32.partialorder %v538, 0.0004427343
        %v540 = vsel %vm539, %v537, %v534
        %v541 = vadd.f32 %v512, 1.0
        %v542 = vlog2.pop %v541
        %v543 = vmul.f32 %v542, 0.6931472
        %v544 = vmul.f32 -0.5, %v512
        %v545 = vadd.f32 %v544, 1.0
        %v546 = vmul.f32 %v545, %v512
        %v547 = vand.u32 2147483647, %v512
        %vm548 = vcmp.lt.f32.partialorder %v547, 0.0004427343
        %v549 = vsel %vm548, %v546, %v543
        %v550 = vadd.f32 %v514, 1.0
        %v551 = vlog2.pop %v550
        %v552 = vmul.f32 %v551, 0.6931472
        %v553 = vmul.f32 -0.5, %v514
        %v554 = vadd.f32 %v553, 1.0
        %v555 = vmul.f32 %v554, %v514
        %v556 = vand.u32 2147483647, %v514
        %vm557 = vcmp.lt.f32.partialorder %v556, 0.0004427343
        %v558 = vsel %vm557, %v555, %v552
        %v559 = vadd.f32 %v516, 1.0
        %v560 = vlog2.pop %v559
        %v561 = vmul.f32 %v560, 0.6931472
        %v562 = vmul.f32 -0.5, %v516
        %v563 = vadd.f32 %v562, 1.0
        %v564 = vmul.f32 %v563, %v516
        %v565 = vand.u32 2147483647, %v516
        %vm566 = vcmp.lt.f32.partialorder %v565, 0.0004427343
        %v567 = vsel %vm566, %v564, %v561
        %v568 = vadd.f32 %v518, 1.0
        %v569 = vlog2.pop %v568
        %v570 = vmul.f32 %v569, 0.6931472
        %v571 = vmul.f32 -0.5, %v518
        %v572 = vadd.f32 %v571, 1.0
        %v573 = vmul.f32 %v572, %v518
        %v574 = vand.u32 2147483647, %v518
        %vm575 = vcmp.lt.f32.partialorder %v574, 0.0004427343
        %v576 = vsel %vm575, %v573, %v570
        %v577 = vadd.f32 %v520, 1.0
        %v578 = vlog2.pop %v577
        %v579 = vmul.f32 %v578, 0.6931472
        %v580 = vmul.f32 -0.5, %v520
        %v581 = vadd.f32 %v580, 1.0
        %v582 = vmul.f32 %v581, %v520
        %v583 = vand.u32 2147483647, %v520
        %vm584 = vcmp.lt.f32.partialorder %v583, 0.0004427343
        %v585 = vsel %vm584, %v582, %v579
        %v586 = vadd.f32 %v522, 1.0
        %v587 = vlog2.pop %v586
        %v588 = vmul.f32 %v587, 0.6931472
        %v589 = vmul.f32 -0.5, %v522
        %v590 = vadd.f32 %v589, 1.0
        %v591 = vmul.f32 %v590, %v522
        %v592 = vand.u32 2147483647, %v522
        %vm593 = vcmp.lt.f32.partialorder %v592, 0.0004427343
        %v594 = vsel %vm593, %v591, %v588
        %v595 = vadd.f32 %v467, %v531
        %v596 = vadd.f32 %v468, %v540
        %v597 = vadd.f32 %v469, %v549
        %v598 = vadd.f32 %v470, %v558
        %v599 = vadd.f32 %v471, %v567
        %v600 = vadd.f32 %v472, %v576
        %v601 = vadd.f32 %v473, %v585
        %v602 = vadd.f32 %v474, %v594
        %v603 = vsel %vm475, %v483, %v595
        %v604 = vsel %vm476, %v484, %v596
        %v605 = vsel %vm477, %v485, %v597
        %v606 = vsel %vm478, %v486, %v598
        %v607 = vsel %vm479, %v487, %v599
        %v608 = vsel %vm480, %v488, %v600
        %v609 = vsel %vm481, %v489, %v601
        %v610 = vsel %vm482, %v490, %v602
        %v611 = vmax.f32 %v332, 0.0
        %v612 = vmax.f32 %v334, 0.0
        %v613 = vmax.f32 %v445, 0.0
        %v614 = vmax.f32 %v447, 0.0
        %v615 = vmul.f32 %v603, %v338
        %v616 = vmul.f32 %v604, %v340
        %v617 = vmul.f32 %v605, %v451
        %v618 = vmul.f32 %v606, %v453
        %v619 = vmul.f32 %v615, %v338
        %v620 = vmul.f32 %v616, %v340
        %v621 = vmul.f32 %v617, %v451
        %v622 = vmul.f32 %v618, %v453
        %v623 = vmul.f32 %v607, %v344
        %v624 = vmul.f32 %v608, %v346
        %v625 = vmul.f32 %v609, %v457
        %v626 = vmul.f32 %v610, %v459
        %v627 = vmul.f32 %v623, %v344
        %v628 = vmul.f32 %v624, %v346
        %v629 = vmul.f32 %v625, %v457
        %v630 = vmul.f32 %v626, %v459
        %v631 = vadd.f32 %v619, %v627
        %v632 = vadd.f32 %v620, %v628
        %v633 = vadd.f32 %v621, %v629
        %v634 = vadd.f32 %v622, %v630
        %v635 = vsub.f32 0.0, %v631
        %v636 = vsub.f32 0.0, %v632
        %v637 = vsub.f32 0.0, %v633
        %v638 = vsub.f32 0.0, %v634
        %v639 = vmul.f32 %v635, 1.442695
        %v640 = vpow.pop %v639
        %v641 = vmul.f32 %v636, 1.442695
        %v642 = vpow.pop %v641
        %v643 = vmul.f32 %v637, 1.442695
        %v644 = vpow.pop %v643
        %v645 = vmul.f32 %v638, 1.442695
        %v646 = vpow.pop %v645
        %v647 = vmul.f32 %v611, %v640
        %v648 = vmul.f32 %v612, %v642
        %v649 = vmul.f32 %v613, %v644
        %v650 = vmul.f32 %v614, %v646
        %v651 = vmul.f32 %v308, %v647
        %v652 = vmul.f32 %v310, %v648
        %v653 = vmul.f32 %v421, %v649
        %v654 = vmul.f32 %v423, %v650
        %v655 = vmul.f32 %v314, %v647
        %v656 = vmul.f32 %v316, %v648
        %v657 = vmul.f32 %v427, %v649
        %v658 = vmul.f32 %v429, %v650
        %v659 = vand.u32 2147483647, %v350
        %vm660 = vcmp.le.f32.partialorder %v659, 0.7853982
        %vm661 = vcmp.lt.s32.totalorder %v350, 0
        %v662 = vand.u32 %v350, 2139095040
        %v663 = vshrl.u32 %v662, 23
        %v664 = vsub.s32 %v663, 127
        %v665 = vand.u32 2147483647, %v350
        %v666 = vand.u32 %v665, 8388607
        %v667 = vor.u32 %v666, 8388608
        %v668 = vsub.s32 0, %v667
        %v669 = vadd.s32 %v664, 1
        %vm670 = vcmp.gt.s32.totalorder %v669, 0
        %v671 = vsel %vm670, %v669, 0
        %v672 = vshrl.u32 %v671, 5
        %v673 = vand.u32 %v671, 31
        %v674 = vsub.s32 32, %v673
        %v675 = vshrl.u32 683565275, %v674
        %v676 = vshll.u32 683565275, %v673
        %v677 = vshrl.u32 2475754826, %v674
        %v678 = vor.u32 %v676, %v677
        %v679 = vshll.u32 2475754826, %v673
        %v680 = vshrl.u32 2131351028, %v674
        %v681 = vor.u32 %v679, %v680
        %v682 = vshll.u32 2131351028, %v673
        %v683 = vshrl.u32 2102212464, %v674
        %v684 = vor.u32 %v682, %v683
        %v685 = vshll.u32 2102212464, %v673
        %v686 = vshrl.u32 920167782, %v674
        %v687 = vor.u32 %v685, %v686
        %v688 = vshll.u32 920167782, %v673
        %v689 = vshrl.u32 1326507024, %v674
        %v690 = vor.u32 %v688, %v689
        %vm691 = vcmp.lt.s32.totalorder %v672, 1
        %vm692 = vcmp.lt.s32.totalorder %v672, 2
        %vm693 = vcmp.lt.s32.totalorder %v672, 3
        %vm694 = vcmp.lt.s32.totalorder %v672, 4
        %v695 = vsel %vm691, %v675, %v678
        %v696 = vsel %vm694, %v684, 2102212464
        %v697 = vsel %vm693, %v681, %v696
        %v698 = vsel %vm692, %v695, %v697
        %v699 = vsel %vm691, %v678, %v681
        %v700 = vsel %vm694, %v687, 920167782
        %v701 = vsel %vm693, %v684, %v700
        %v702 = vsel %vm692, %v699, %v701
        %v703 = vsel %vm691, %v681, %v684
        %v704 = vsel %vm694, %v690, 1326507024
        %v705 = vsel %vm693, %v687, %v704
        %v706 = vsel %vm692, %v703, %v705
        %v707 = vshll.u32 %v667, 8
        %v708 = vmul.u32.u64.compose %v707, %v706
        %v709 = vextract.low.u32 %v708
        %v710 = vextract.high.u32 %v708
        %v711 = vmul.u32.u64.compose %v707, %v702
        %v712 = vextract.low.u32 %v711
        %v713 = vextract.high.u32 %v711
        %v714 = vmul.u32 %v707, %v698
        %v715 = vadd.s32 %v710, %v712
        %vm716 = vc.u32 %v710, %v712
        %v717 = vadd.s32 %v713, 1
        %v718 = vsel %vm716, %v717, %v713
        %v719 = vadd.s32 %v714, %v718
        %v720 = vadd.s32 %v719, 536870912
        %v721 = vshrl.u32 %v720, 30
        %v722 = vshll.u32 %v721, 30
        %v723 = vsub.s32 %v719, %v722
        %vm724 = vcmp.lt.s32.totalorder %v723, 0
        %v725 = vsub.s32 0, %v723
        %v726 = vsel %vm724, %v725, %v723
        %v727 = vclz %v726
        %v728 = vsub.s32 %v727, 2
        %vm729 = vcmp.gt.s32.totalorder 0, %v728
        %v730 = vsel %vm729, 0, %v728
        %v731 = vsub.s32 32, %v730
        %v732 = vshll.u32 %v723, %v730
        %v733 = vshrl.u32 %v715, %v731
        %v734 = vor.u32 %v732, %v733
        %v735 = vsub.s32 4294967266, %v730
        %v736 = vadd.s32 %v735, 127
        %v737 = vshll.u32 %v736, 23
        %v738 = vor.u32 4788187, %v737
        %v739 = vand.u32 2147483647, %v738
        %v741 = vcvt.s32.f32 %v734
        %v742 = vmul.f32 %v741, %v739
        %v743 = vxor.u32 %v742, 2147483648
        %v744 = vsel %vm661, %v743, %v742
        %v745 = vsub.s32 4, %v721
        %v746 = vsel %vm661, %v745, %v721
        %v747 = vsel %vm660, %v350, %v744
        %v748 = vsel %vm660, 0, %v746
        %v749 = vcosq.f32.pop %v747
        %v750 = vsinq.f32.pop %v747
        %vm751 = vweird.f32 %v350
        %v752 = vadd.s32 %v748, 3
        %v753 = vand.u32 %v752, 3
        %vm754 = vcmp.lt.s32.totalorder %v753, 2
        %vm755 = vcmp.eq.s32.totalorder %v753, 0
        %v756 = vxor.u32 %v750, 2147483648
        %v757 = vsel %vm755, %v749, %v756
        %vm758 = vcmp.eq.s32.totalorder %v753, 2
        %v759 = vxor.u32 %v749, 2147483648
        %v760 = vsel %vm758, %v759, %v750
        %v761 = vsel %vm754, %v757, %v760
        %v762 = vsel %vm751, nan, %v761
        %v763 = vand.u32 2147483647, %v352
        %vm764 = vcmp.le.f32.partialorder %v763, 0.7853982
        %vm765 = vcmp.lt.s32.totalorder %v352, 0
        %v766 = vand.u32 %v352, 2139095040
        %v767 = vshrl.u32 %v766, 23
        %v768 = vsub.s32 %v767, 127
        %v769 = vand.u32 2147483647, %v352
        %v770 = vand.u32 %v769, 8388607
        %v771 = vor.u32 %v770, 8388608
        %v772 = vsub.s32 0, %v771
        %v773 = vadd.s32 %v768, 1
        %vm774 = vcmp.gt.s32.totalorder %v773, 0
        %v775 = vsel %vm774, %v773, 0
        %v776 = vshrl.u32 %v775, 5
        %v777 = vand.u32 %v775, 31
        %v778 = vsub.s32 32, %v777
        %v779 = vshrl.u32 683565275, %v778
        %v780 = vshll.u32 683565275, %v777
        %v781 = vshrl.u32 2475754826, %v778
        %v782 = vor.u32 %v780, %v781
        %v783 = vshll.u32 2475754826, %v777
        %v784 = vshrl.u32 2131351028, %v778
        %v785 = vor.u32 %v783, %v784
        %v786 = vshll.u32 2131351028, %v777
        %v787 = vshrl.u32 2102212464, %v778
        %v788 = vor.u32 %v786, %v787
        %v789 = vshll.u32 2102212464, %v777
        %v790 = vshrl.u32 920167782, %v778
        %v791 = vor.u32 %v789, %v790
        %v792 = vshll.u32 920167782, %v777
        %v793 = vshrl.u32 1326507024, %v778
        %v794 = vor.u32 %v792, %v793
        %vm795 = vcmp.lt.s32.totalorder %v776, 1
        %vm796 = vcmp.lt.s32.totalorder %v776, 2
        %vm797 = vcmp.lt.s32.totalorder %v776, 3
        %vm798 = vcmp.lt.s32.totalorder %v776, 4
        %v799 = vsel %vm795, %v779, %v782
        %v800 = vsel %vm798, %v788, 2102212464
        %v801 = vsel %vm797, %v785, %v800
        %v802 = vsel %vm796, %v799, %v801
        %v803 = vsel %vm795, %v782, %v785
        %v804 = vsel %vm798, %v791, 920167782
        %v805 = vsel %vm797, %v788, %v804
        %v806 = vsel %vm796, %v803, %v805
        %v807 = vsel %vm795, %v785, %v788
        %v808 = vsel %vm798, %v794, 1326507024
        %v809 = vsel %vm797, %v791, %v808
        %v810 = vsel %vm796, %v807, %v809
        %v811 = vshll.u32 %v771, 8
        %v812 = vmul.u32.u64.compose %v811, %v810
        %v813 = vextract.low.u32 %v812
        %v814 = vextract.high.u32 %v812
        %v815 = vmul.u32.u64.compose %v811, %v806
        %v816 = vextract.low.u32 %v815
        %v817 = vextract.high.u32 %v815
        %v818 = vmul.u32 %v811, %v802
        %v819 = vadd.s32 %v814, %v816
        %vm820 = vc.u32 %v814, %v816
        %v821 = vadd.s32 %v817, 1
        %v822 = vsel %vm820, %v821, %v817
        %v823 = vadd.s32 %v818, %v822
        %v824 = vadd.s32 %v823, 536870912
        %v825 = vshrl.u32 %v824, 30
        %v826 = vshll.u32 %v825, 30
        %v827 = vsub.s32 %v823, %v826
        %vm828 = vcmp.lt.s32.totalorder %v827, 0
        %v829 = vsub.s32 0, %v827
        %v830 = vsel %vm828, %v829, %v827
        %v831 = vclz %v830
        %v832 = vsub.s32 %v831, 2
        %vm833 = vcmp.gt.s32.totalorder 0, %v832
        %v834 = vsel %vm833, 0, %v832
        %v835 = vsub.s32 32, %v834
        %v836 = vshll.u32 %v827, %v834
        %v837 = vshrl.u32 %v819, %v835
        %v838 = vor.u32 %v836, %v837
        %v839 = vsub.s32 4294967266, %v834
        %v840 = vadd.s32 %v839, 127
        %v841 = vshll.u32 %v840, 23
        %v842 = vor.u32 4788187, %v841
        %v843 = vand.u32 2147483647, %v842
        %v845 = vcvt.s32.f32 %v838
        %v846 = vmul.f32 %v845, %v843
        %v847 = vxor.u32 %v846, 2147483648
        %v848 = vsel %vm765, %v847, %v846
        %v849 = vsub.s32 4, %v825
        %v850 = vsel %vm765, %v849, %v825
        %v851 = vsel %vm764, %v352, %v848
        %v852 = vsel %vm764, 0, %v850
        %v853 = vcosq.f32.pop %v851
        %v854 = vsinq.f32.pop %v851
        %vm855 = vweird.f32 %v352
        %v856 = vadd.s32 %v852, 3
        %v857 = vand.u32 %v856, 3
        %vm858 = vcmp.lt.s32.totalorder %v857, 2
        %vm859 = vcmp.eq.s32.totalorder %v857, 0
        %v860 = vxor.u32 %v854, 2147483648
        %v861 = vsel %vm859, %v853, %v860
        %vm862 = vcmp.eq.s32.totalorder %v857, 2
        %v863 = vxor.u32 %v853, 2147483648
        %v864 = vsel %vm862, %v863, %v854
        %v865 = vsel %vm858, %v861, %v864
        %v866 = vsel %vm855, nan, %v865
        %v867 = vand.u32 2147483647, %v463
        %vm868 = vcmp.le.f32.partialorder %v867, 0.7853982
        %vm869 = vcmp.lt.s32.totalorder %v463, 0
        %v870 = vand.u32 %v463, 2139095040
        %v871 = vshrl.u32 %v870, 23
        %v872 = vsub.s32 %v871, 127
        %v873 = vand.u32 2147483647, %v463
        %v874 = vand.u32 %v873, 8388607
        %v875 = vor.u32 %v874, 8388608
        %v876 = vsub.s32 0, %v875
        %v877 = vadd.s32 %v872, 1
        %vm878 = vcmp.gt.s32.totalorder %v877, 0
        %v879 = vsel %vm878, %v877, 0
        %v880 = vshrl.u32 %v879, 5
        %v881 = vand.u32 %v879, 31
        %v882 = vsub.s32 32, %v881
        %v883 = vshrl.u32 683565275, %v882
        %v884 = vshll.u32 683565275, %v881
        %v885 = vshrl.u32 2475754826, %v882
        %v886 = vor.u32 %v884, %v885
        %v887 = vshll.u32 2475754826, %v881
        %v888 = vshrl.u32 2131351028, %v882
        %v889 = vor.u32 %v887, %v888
        %v890 = vshll.u32 2131351028, %v881
        %v891 = vshrl.u32 2102212464, %v882
        %v892 = vor.u32 %v890, %v891
        %v893 = vshll.u32 2102212464, %v881
        %v894 = vshrl.u32 920167782, %v882
        %v895 = vor.u32 %v893, %v894
        %v896 = vshll.u32 920167782, %v881
        %v897 = vshrl.u32 1326507024, %v882
        %v898 = vor.u32 %v896, %v897
        %vm899 = vcmp.lt.s32.totalorder %v880, 1
        %vm900 = vcmp.lt.s32.totalorder %v880, 2
        %vm901 = vcmp.lt.s32.totalorder %v880, 3
        %vm902 = vcmp.lt.s32.totalorder %v880, 4
        %v903 = vsel %vm899, %v883, %v886
        %v904 = vsel %vm902, %v892, 2102212464
        %v905 = vsel %vm901, %v889, %v904
        %v906 = vsel %vm900, %v903, %v905
        %v907 = vsel %vm899, %v886, %v889
        %v908 = vsel %vm902, %v895, 920167782
        %v909 = vsel %vm901, %v892, %v908
        %v910 = vsel %vm900, %v907, %v909
        %v911 = vsel %vm899, %v889, %v892
        %v912 = vsel %vm902, %v898, 1326507024
        %v913 = vsel %vm901, %v895, %v912
        %v914 = vsel %vm900, %v911, %v913
        %v915 = vshll.u32 %v875, 8
        %v916 = vmul.u32.u64.compose %v915, %v914
        %v917 = vextract.low.u32 %v916
        %v918 = vextract.high.u32 %v916
        %v919 = vmul.u32.u64.compose %v915, %v910
        %v920 = vextract.low.u32 %v919
        %v921 = vextract.high.u32 %v919
        %v922 = vmul.u32 %v915, %v906
        %v923 = vadd.s32 %v918, %v920
        %vm924 = vc.u32 %v918, %v920
        %v925 = vadd.s32 %v921, 1
        %v926 = vsel %vm924, %v925, %v921
        %v927 = vadd.s32 %v922, %v926
        %v928 = vadd.s32 %v927, 536870912
        %v929 = vshrl.u32 %v928, 30
        %v930 = vshll.u32 %v929, 30
        %v931 = vsub.s32 %v927, %v930
        %vm932 = vcmp.lt.s32.totalorder %v931, 0
        %v933 = vsub.s32 0, %v931
        %v934 = vsel %vm932, %v933, %v931
        %v935 = vclz %v934
        %v936 = vsub.s32 %v935, 2
        %vm937 = vcmp.gt.s32.totalorder 0, %v936
        %v938 = vsel %vm937, 0, %v936
        %v939 = vsub.s32 32, %v938
        %v940 = vshll.u32 %v931, %v938
        %v941 = vshrl.u32 %v923, %v939
        %v942 = vor.u32 %v940, %v941
        %v943 = vsub.s32 4294967266, %v938
        %v944 = vadd.s32 %v943, 127
        %v945 = vshll.u32 %v944, 23
        %v946 = vor.u32 4788187, %v945
        %v947 = vand.u32 2147483647, %v946
        %v949 = vcvt.s32.f32 %v942
        %v950 = vmul.f32 %v949, %v947
        %v951 = vxor.u32 %v950, 2147483648
        %v952 = vsel %vm869, %v951, %v950
        %v953 = vsub.s32 4, %v929
        %v954 = vsel %vm869, %v953, %v929
        %v955 = vsel %vm868, %v463, %v952
        %v956 = vsel %vm868, 0, %v954
        %v957 = vcosq.f32.pop %v955
        %v958 = vsinq.f32.pop %v955
        %vm959 = vweird.f32 %v463
        %v960 = vadd.s32 %v956, 3
        %v961 = vand.u32 %v960, 3
        %vm962 = vcmp.lt.s32.totalorder %v961, 2
        %vm963 = vcmp.eq.s32.totalorder %v961, 0
        %v964 = vxor.u32 %v958, 2147483648
        %v965 = vsel %vm963, %v957, %v964
        %vm966 = vcmp.eq.s32.totalorder %v961, 2
        %v967 = vxor.u32 %v957, 2147483648
        %v968 = vsel %vm966, %v967, %v958
        %v969 = vsel %vm962, %v965, %v968
        %v970 = vsel %vm959, nan, %v969
        %v971 = vand.u32 2147483647, %v465
        %vm972 = vcmp.le.f32.partialorder %v971, 0.7853982
        %vm973 = vcmp.lt.s32.totalorder %v465, 0
        %v974 = vand.u32 %v465, 2139095040
        %v975 = vshrl.u32 %v974, 23
        %v976 = vsub.s32 %v975, 127
        %v977 = vand.u32 2147483647, %v465
        %v978 = vand.u32 %v977, 8388607
        %v979 = vor.u32 %v978, 8388608
        %v980 = vsub.s32 0, %v979
        %v981 = vadd.s32 %v976, 1
        %vm982 = vcmp.gt.s32.totalorder %v981, 0
        %v983 = vsel %vm982, %v981, 0
        %v984 = vshrl.u32 %v983, 5
        %v985 = vand.u32 %v983, 31
        %v986 = vsub.s32 32, %v985
        %v987 = vshrl.u32 683565275, %v986
        %v988 = vshll.u32 683565275, %v985
        %v989 = vshrl.u32 2475754826, %v986
        %v990 = vor.u32 %v988, %v989
        %v991 = vshll.u32 2475754826, %v985
        %v992 = vshrl.u32 2131351028, %v986
        %v993 = vor.u32 %v991, %v992
        %v994 = vshll.u32 2131351028, %v985
        %v995 = vshrl.u32 2102212464, %v986
        %v996 = vor.u32 %v994, %v995
        %v997 = vshll.u32 2102212464, %v985
        %v998 = vshrl.u32 920167782, %v986
        %v999 = vor.u32 %v997, %v998
        %v1000 = vshll.u32 920167782, %v985
        %v1001 = vshrl.u32 1326507024, %v986
        %v1002 = vor.u32 %v1000, %v1001
        %vm1003 = vcmp.lt.s32.totalorder %v984, 1
        %vm1004 = vcmp.lt.s32.totalorder %v984, 2
        %vm1005 = vcmp.lt.s32.totalorder %v984, 3
        %vm1006 = vcmp.lt.s32.totalorder %v984, 4
        %v1007 = vsel %vm1003, %v987, %v990
        %v1008 = vsel %vm1006, %v996, 2102212464
        %v1009 = vsel %vm1005, %v993, %v1008
        %v1010 = vsel %vm1004, %v1007, %v1009
        %v1011 = vsel %vm1003, %v990, %v993
        %v1012 = vsel %vm1006, %v999, 920167782
        %v1013 = vsel %vm1005, %v996, %v1012
        %v1014 = vsel %vm1004, %v1011, %v1013
        %v1015 = vsel %vm1003, %v993, %v996
        %v1016 = vsel %vm1006, %v1002, 1326507024
        %v1017 = vsel %vm1005, %v999, %v1016
        %v1018 = vsel %vm1004, %v1015, %v1017
        %v1019 = vshll.u32 %v979, 8
        %v1020 = vmul.u32.u64.compose %v1019, %v1018
        %v1021 = vextract.low.u32 %v1020
        %v1022 = vextract.high.u32 %v1020
        %v1023 = vmul.u32.u64.compose %v1019, %v1014
        %v1024 = vextract.low.u32 %v1023
        %v1025 = vextract.high.u32 %v1023
        %v1026 = vmul.u32 %v1019, %v1010
        %v1027 = vadd.s32 %v1022, %v1024
        %vm1028 = vc.u32 %v1022, %v1024
        %v1029 = vadd.s32 %v1025, 1
        %v1030 = vsel %vm1028, %v1029, %v1025
        %v1031 = vadd.s32 %v1026, %v1030
        %v1032 = vadd.s32 %v1031, 536870912
        %v1033 = vshrl.u32 %v1032, 30
        %v1034 = vshll.u32 %v1033, 30
        %v1035 = vsub.s32 %v1031, %v1034
        %vm1036 = vcmp.lt.s32.totalorder %v1035, 0
        %v1037 = vsub.s32 0, %v1035
        %v1038 = vsel %vm1036, %v1037, %v1035
        %v1039 = vclz %v1038
        %v1040 = vsub.s32 %v1039, 2
        %vm1041 = vcmp.gt.s32.totalorder 0, %v1040
        %v1042 = vsel %vm1041, 0, %v1040
        %v1043 = vsub.s32 32, %v1042
        %v1044 = vshll.u32 %v1035, %v1042
        %v1045 = vshrl.u32 %v1027, %v1043
        %v1046 = vor.u32 %v1044, %v1045
        %v1047 = vsub.s32 4294967266, %v1042
        %v1048 = vadd.s32 %v1047, 127
        %v1049 = vshll.u32 %v1048, 23
        %v1050 = vor.u32 4788187, %v1049
        %v1051 = vand.u32 2147483647, %v1050
        %v1053 = vcvt.s32.f32 %v1046
        %v1054 = vmul.f32 %v1053, %v1051
        %v1055 = vxor.u32 %v1054, 2147483648
        %v1056 = vsel %vm973, %v1055, %v1054
        %v1057 = vsub.s32 4, %v1033
        %v1058 = vsel %vm973, %v1057, %v1033
        %v1059 = vsel %vm972, %v465, %v1056
        %v1060 = vsel %vm972, 0, %v1058
        %v1061 = vcosq.f32.pop %v1059
        %v1062 = vsinq.f32.pop %v1059
        %vm1063 = vweird.f32 %v465
        %v1064 = vadd.s32 %v1060, 3
        %v1065 = vand.u32 %v1064, 3
        %vm1066 = vcmp.lt.s32.totalorder %v1065, 2
        %vm1067 = vcmp.eq.s32.totalorder %v1065, 0
        %v1068 = vxor.u32 %v1062, 2147483648
        %v1069 = vsel %vm1067, %v1061, %v1068
        %vm1070 = vcmp.eq.s32.totalorder %v1065, 2
        %v1071 = vxor.u32 %v1061, 2147483648
        %v1072 = vsel %vm1070, %v1071, %v1062
        %v1073 = vsel %vm1066, %v1069, %v1072
        %v1074 = vsel %vm1063, nan, %v1073
        %v1075 = vand.u32 2147483647, %v350
        %vm1076 = vcmp.le.f32.partialorder %v1075, 0.7853982
        %vm1077 = vcmp.lt.s32.totalorder %v350, 0
        %v1078 = vand.u32 %v350, 2139095040
        %v1079 = vshrl.u32 %v1078, 23
        %v1080 = vsub.s32 %v1079, 127
        %v1081 = vand.u32 2147483647, %v350
        %v1082 = vand.u32 %v1081, 8388607
        %v1083 = vor.u32 %v1082, 8388608
        %v1084 = vsub.s32 0, %v1083
        %v1085 = vadd.s32 %v1080, 1
        %vm1086 = vcmp.gt.s32.totalorder %v1085, 0
        %v1087 = vsel %vm1086, %v1085, 0
        %v1088 = vshrl.u32 %v1087, 5
        %v1089 = vand.u32 %v1087, 31
        %v1090 = vsub.s32 32, %v1089
        %v1091 = vshrl.u32 683565275, %v1090
        %v1092 = vshll.u32 683565275, %v1089
        %v1093 = vshrl.u32 2475754826, %v1090
        %v1094 = vor.u32 %v1092, %v1093
        %v1095 = vshll.u32 2475754826, %v1089
        %v1096 = vshrl.u32 2131351028, %v1090
        %v1097 = vor.u32 %v1095, %v1096
        %v1098 = vshll.u32 2131351028, %v1089
        %v1099 = vshrl.u32 2102212464, %v1090
        %v1100 = vor.u32 %v1098, %v1099
        %v1101 = vshll.u32 2102212464, %v1089
        %v1102 = vshrl.u32 920167782, %v1090
        %v1103 = vor.u32 %v1101, %v1102
        %v1104 = vshll.u32 920167782, %v1089
        %v1105 = vshrl.u32 1326507024, %v1090
        %v1106 = vor.u32 %v1104, %v1105
        %vm1107 = vcmp.lt.s32.totalorder %v1088, 1
        %vm1108 = vcmp.lt.s32.totalorder %v1088, 2
        %vm1109 = vcmp.lt.s32.totalorder %v1088, 3
        %vm1110 = vcmp.lt.s32.totalorder %v1088, 4
        %v1111 = vsel %vm1107, %v1091, %v1094
        %v1112 = vsel %vm1110, %v1100, 2102212464
        %v1113 = vsel %vm1109, %v1097, %v1112
        %v1114 = vsel %vm1108, %v1111, %v1113
        %v1115 = vsel %vm1107, %v1094, %v1097
        %v1116 = vsel %vm1110, %v1103, 920167782
        %v1117 = vsel %vm1109, %v1100, %v1116
        %v1118 = vsel %vm1108, %v1115, %v1117
        %v1119 = vsel %vm1107, %v1097, %v1100
        %v1120 = vsel %vm1110, %v1106, 1326507024
        %v1121 = vsel %vm1109, %v1103, %v1120
        %v1122 = vsel %vm1108, %v1119, %v1121
        %v1123 = vshll.u32 %v1083, 8
        %v1124 = vmul.u32.u64.compose %v1123, %v1122
        %v1125 = vextract.low.u32 %v1124
        %v1126 = vextract.high.u32 %v1124
        %v1127 = vmul.u32.u64.compose %v1123, %v1118
        %v1128 = vextract.low.u32 %v1127
        %v1129 = vextract.high.u32 %v1127
        %v1130 = vmul.u32 %v1123, %v1114
        %v1131 = vadd.s32 %v1126, %v1128
        %vm1132 = vc.u32 %v1126, %v1128
        %v1133 = vadd.s32 %v1129, 1
        %v1134 = vsel %vm1132, %v1133, %v1129
        %v1135 = vadd.s32 %v1130, %v1134
        %v1136 = vadd.s32 %v1135, 536870912
        %v1137 = vshrl.u32 %v1136, 30
        %v1138 = vshll.u32 %v1137, 30
        %v1139 = vsub.s32 %v1135, %v1138
        %vm1140 = vcmp.lt.s32.totalorder %v1139, 0
        %v1141 = vsub.s32 0, %v1139
        %v1142 = vsel %vm1140, %v1141, %v1139
        %v1143 = vclz %v1142
        %v1144 = vsub.s32 %v1143, 2
        %vm1145 = vcmp.gt.s32.totalorder 0, %v1144
        %v1146 = vsel %vm1145, 0, %v1144
        %v1147 = vsub.s32 32, %v1146
        %v1148 = vshll.u32 %v1139, %v1146
        %v1149 = vshrl.u32 %v1131, %v1147
        %v1150 = vor.u32 %v1148, %v1149
        %v1151 = vsub.s32 4294967266, %v1146
        %v1152 = vadd.s32 %v1151, 127
        %v1153 = vshll.u32 %v1152, 23
        %v1154 = vor.u32 4788187, %v1153
        %v1155 = vand.u32 2147483647, %v1154
        %v1157 = vcvt.s32.f32 %v1150
        %v1158 = vmul.f32 %v1157, %v1155
        %v1159 = vxor.u32 %v1158, 2147483648
        %v1160 = vsel %vm1077, %v1159, %v1158
        %v1161 = vsub.s32 4, %v1137
        %v1162 = vsel %vm1077, %v1161, %v1137
        %v1163 = vsel %vm1076, %v350, %v1160
        %v1164 = vsel %vm1076, 0, %v1162
        %v1165 = vcosq.f32.pop %v1163
        %v1166 = vsinq.f32.pop %v1163
        %vm1167 = vweird.f32 %v350
        %v1168 = vand.u32 %v1164, 3
        %vm1169 = vcmp.lt.s32.totalorder %v1168, 2
        %vm1170 = vcmp.eq.s32.totalorder %v1168, 0
        %v1171 = vxor.u32 %v1166, 2147483648
        %v1172 = vsel %vm1170, %v1165, %v1171
        %vm1173 = vcmp.eq.s32.totalorder %v1168, 2
        %v1174 = vxor.u32 %v1165, 2147483648
        %v1175 = vsel %vm1173, %v1174, %v1166
        %v1176 = vsel %vm1169, %v1172, %v1175
        %v1177 = vsel %vm1167, nan, %v1176
        %v1178 = vand.u32 2147483647, %v352
        %vm1179 = vcmp.le.f32.partialorder %v1178, 0.7853982
        %vm1180 = vcmp.lt.s32.totalorder %v352, 0
        %v1181 = vand.u32 %v352, 2139095040
        %v1182 = vshrl.u32 %v1181, 23
        %v1183 = vsub.s32 %v1182, 127
        %v1184 = vand.u32 2147483647, %v352
        %v1185 = vand.u32 %v1184, 8388607
        %v1186 = vor.u32 %v1185, 8388608
        %v1187 = vsub.s32 0, %v1186
        %v1188 = vadd.s32 %v1183, 1
        %vm1189 = vcmp.gt.s32.totalorder %v1188, 0
        %v1190 = vsel %vm1189, %v1188, 0
        %v1191 = vshrl.u32 %v1190, 5
        %v1192 = vand.u32 %v1190, 31
        %v1193 = vsub.s32 32, %v1192
        %v1194 = vshrl.u32 683565275, %v1193
        %v1195 = vshll.u32 683565275, %v1192
        %v1196 = vshrl.u32 2475754826, %v1193
        %v1197 = vor.u32 %v1195, %v1196
        %v1198 = vshll.u32 2475754826, %v1192
        %v1199 = vshrl.u32 2131351028, %v1193
        %v1200 = vor.u32 %v1198, %v1199
        %v1201 = vshll.u32 2131351028, %v1192
        %v1202 = vshrl.u32 2102212464, %v1193
        %v1203 = vor.u32 %v1201, %v1202
        %v1204 = vshll.u32 2102212464, %v1192
        %v1205 = vshrl.u32 920167782, %v1193
        %v1206 = vor.u32 %v1204, %v1205
        %v1207 = vshll.u32 920167782, %v1192
        %v1208 = vshrl.u32 1326507024, %v1193
        %v1209 = vor.u32 %v1207, %v1208
        %vm1210 = vcmp.lt.s32.totalorder %v1191, 1
        %vm1211 = vcmp.lt.s32.totalorder %v1191, 2
        %vm1212 = vcmp.lt.s32.totalorder %v1191, 3
        %vm1213 = vcmp.lt.s32.totalorder %v1191, 4
        %v1214 = vsel %vm1210, %v1194, %v1197
        %v1215 = vsel %vm1213, %v1203, 2102212464
        %v1216 = vsel %vm1212, %v1200, %v1215
        %v1217 = vsel %vm1211, %v1214, %v1216
        %v1218 = vsel %vm1210, %v1197, %v1200
        %v1219 = vsel %vm1213, %v1206, 920167782
        %v1220 = vsel %vm1212, %v1203, %v1219
        %v1221 = vsel %vm1211, %v1218, %v1220
        %v1222 = vsel %vm1210, %v1200, %v1203
        %v1223 = vsel %vm1213, %v1209, 1326507024
        %v1224 = vsel %vm1212, %v1206, %v1223
        %v1225 = vsel %vm1211, %v1222, %v1224
        %v1226 = vshll.u32 %v1186, 8
        %v1227 = vmul.u32.u64.compose %v1226, %v1225
        %v1228 = vextract.low.u32 %v1227
        %v1229 = vextract.high.u32 %v1227
        %v1230 = vmul.u32.u64.compose %v1226, %v1221
        %v1231 = vextract.low.u32 %v1230
        %v1232 = vextract.high.u32 %v1230
        %v1233 = vmul.u32 %v1226, %v1217
        %v1234 = vadd.s32 %v1229, %v1231
        %vm1235 = vc.u32 %v1229, %v1231
        %v1236 = vadd.s32 %v1232, 1
        %v1237 = vsel %vm1235, %v1236, %v1232
        %v1238 = vadd.s32 %v1233, %v1237
        %v1239 = vadd.s32 %v1238, 536870912
        %v1240 = vshrl.u32 %v1239, 30
        %v1241 = vshll.u32 %v1240, 30
        %v1242 = vsub.s32 %v1238, %v1241
        %vm1243 = vcmp.lt.s32.totalorder %v1242, 0
        %v1244 = vsub.s32 0, %v1242
        %v1245 = vsel %vm1243, %v1244, %v1242
        %v1246 = vclz %v1245
        %v1247 = vsub.s32 %v1246, 2
        %vm1248 = vcmp.gt.s32.totalorder 0, %v1247
        %v1249 = vsel %vm1248, 0, %v1247
        %v1250 = vsub.s32 32, %v1249
        %v1251 = vshll.u32 %v1242, %v1249
        %v1252 = vshrl.u32 %v1234, %v1250
        %v1253 = vor.u32 %v1251, %v1252
        %v1254 = vsub.s32 4294967266, %v1249
        %v1255 = vadd.s32 %v1254, 127
        %v1256 = vshll.u32 %v1255, 23
        %v1257 = vor.u32 4788187, %v1256
        %v1258 = vand.u32 2147483647, %v1257
        %v1260 = vcvt.s32.f32 %v1253
        %v1261 = vmul.f32 %v1260, %v1258
        %v1262 = vxor.u32 %v1261, 2147483648
        %v1263 = vsel %vm1180, %v1262, %v1261
        %v1264 = vsub.s32 4, %v1240
        %v1265 = vsel %vm1180, %v1264, %v1240
        %v1266 = vsel %vm1179, %v352, %v1263
        %v1267 = vsel %vm1179, 0, %v1265
        %v1268 = vcosq.f32.pop %v1266
        %v1269 = vsinq.f32.pop %v1266
        %vm1270 = vweird.f32 %v352
        %v1271 = vand.u32 %v1267, 3
        %vm1272 = vcmp.lt.s32.totalorder %v1271, 2
        %vm1273 = vcmp.eq.s32.totalorder %v1271, 0
        %v1274 = vxor.u32 %v1269, 2147483648
        %v1275 = vsel %vm1273, %v1268, %v1274
        %vm1276 = vcmp.eq.s32.totalorder %v1271, 2
        %v1277 = vxor.u32 %v1268, 2147483648
        %v1278 = vsel %vm1276, %v1277, %v1269
        %v1279 = vsel %vm1272, %v1275, %v1278
        %v1280 = vsel %vm1270, nan, %v1279
        %v1281 = vand.u32 2147483647, %v463
        %vm1282 = vcmp.le.f32.partialorder %v1281, 0.7853982
        %vm1283 = vcmp.lt.s32.totalorder %v463, 0
        %v1284 = vand.u32 %v463, 2139095040
        %v1285 = vshrl.u32 %v1284, 23
        %v1286 = vsub.s32 %v1285, 127
        %v1287 = vand.u32 2147483647, %v463
        %v1288 = vand.u32 %v1287, 8388607
        %v1289 = vor.u32 %v1288, 8388608
        %v1290 = vsub.s32 0, %v1289
        %v1291 = vadd.s32 %v1286, 1
        %vm1292 = vcmp.gt.s32.totalorder %v1291, 0
        %v1293 = vsel %vm1292, %v1291, 0
        %v1294 = vshrl.u32 %v1293, 5
        %v1295 = vand.u32 %v1293, 31
        %v1296 = vsub.s32 32, %v1295
        %v1297 = vshrl.u32 683565275, %v1296
        %v1298 = vshll.u32 683565275, %v1295
        %v1299 = vshrl.u32 2475754826, %v1296
        %v1300 = vor.u32 %v1298, %v1299
        %v1301 = vshll.u32 2475754826, %v1295
        %v1302 = vshrl.u32 2131351028, %v1296
        %v1303 = vor.u32 %v1301, %v1302
        %v1304 = vshll.u32 2131351028, %v1295
        %v1305 = vshrl.u32 2102212464, %v1296
        %v1306 = vor.u32 %v1304, %v1305
        %v1307 = vshll.u32 2102212464, %v1295
        %v1308 = vshrl.u32 920167782, %v1296
        %v1309 = vor.u32 %v1307, %v1308
        %v1310 = vshll.u32 920167782, %v1295
        %v1311 = vshrl.u32 1326507024, %v1296
        %v1312 = vor.u32 %v1310, %v1311
        %vm1313 = vcmp.lt.s32.totalorder %v1294, 1
        %vm1314 = vcmp.lt.s32.totalorder %v1294, 2
        %vm1315 = vcmp.lt.s32.totalorder %v1294, 3
        %vm1316 = vcmp.lt.s32.totalorder %v1294, 4
        %v1317 = vsel %vm1313, %v1297, %v1300
        %v1318 = vsel %vm1316, %v1306, 2102212464
        %v1319 = vsel %vm1315, %v1303, %v1318
        %v1320 = vsel %vm1314, %v1317, %v1319
        %v1321 = vsel %vm1313, %v1300, %v1303
        %v1322 = vsel %vm1316, %v1309, 920167782
        %v1323 = vsel %vm1315, %v1306, %v1322
        %v1324 = vsel %vm1314, %v1321, %v1323
        %v1325 = vsel %vm1313, %v1303, %v1306
        %v1326 = vsel %vm1316, %v1312, 1326507024
        %v1327 = vsel %vm1315, %v1309, %v1326
        %v1328 = vsel %vm1314, %v1325, %v1327
        %v1329 = vshll.u32 %v1289, 8
        %v1330 = vmul.u32.u64.compose %v1329, %v1328
        %v1331 = vextract.low.u32 %v1330
        %v1332 = vextract.high.u32 %v1330
        %v1333 = vmul.u32.u64.compose %v1329, %v1324
        %v1334 = vextract.low.u32 %v1333
        %v1335 = vextract.high.u32 %v1333
        %v1336 = vmul.u32 %v1329, %v1320
        %v1337 = vadd.s32 %v1332, %v1334
        %vm1338 = vc.u32 %v1332, %v1334
        %v1339 = vadd.s32 %v1335, 1
        %v1340 = vsel %vm1338, %v1339, %v1335
        %v1341 = vadd.s32 %v1336, %v1340
        %v1342 = vadd.s32 %v1341, 536870912
        %v1343 = vshrl.u32 %v1342, 30
        %v1344 = vshll.u32 %v1343, 30
        %v1345 = vsub.s32 %v1341, %v1344
        %vm1346 = vcmp.lt.s32.totalorder %v1345, 0
        %v1347 = vsub.s32 0, %v1345
        %v1348 = vsel %vm1346, %v1347, %v1345
        %v1349 = vclz %v1348
        %v1350 = vsub.s32 %v1349, 2
        %vm1351 = vcmp.gt.s32.totalorder 0, %v1350
        %v1352 = vsel %vm1351, 0, %v1350
        %v1353 = vsub.s32 32, %v1352
        %v1354 = vshll.u32 %v1345, %v1352
        %v1355 = vshrl.u32 %v1337, %v1353
        %v1356 = vor.u32 %v1354, %v1355
        %v1357 = vsub.s32 4294967266, %v1352
        %v1358 = vadd.s32 %v1357, 127
        %v1359 = vshll.u32 %v1358, 23
        %v1360 = vor.u32 4788187, %v1359
        %v1361 = vand.u32 2147483647, %v1360
        %v1363 = vcvt.s32.f32 %v1356
        %v1364 = vmul.f32 %v1363, %v1361
        %v1365 = vxor.u32 %v1364, 2147483648
        %v1366 = vsel %vm1283, %v1365, %v1364
        %v1367 = vsub.s32 4, %v1343
        %v1368 = vsel %vm1283, %v1367, %v1343
        %v1369 = vsel %vm1282, %v463, %v1366
        %v1370 = vsel %vm1282, 0, %v1368
        %v1371 = vcosq.f32.pop %v1369
        %v1372 = vsinq.f32.pop %v1369
        %vm1373 = vweird.f32 %v463
        %v1374 = vand.u32 %v1370, 3
        %vm1375 = vcmp.lt.s32.totalorder %v1374, 2
        %vm1376 = vcmp.eq.s32.totalorder %v1374, 0
        %v1377 = vxor.u32 %v1372, 2147483648
        %v1378 = vsel %vm1376, %v1371, %v1377
        %vm1379 = vcmp.eq.s32.totalorder %v1374, 2
        %v1380 = vxor.u32 %v1371, 2147483648
        %v1381 = vsel %vm1379, %v1380, %v1372
        %v1382 = vsel %vm1375, %v1378, %v1381
        %v1383 = vsel %vm1373, nan, %v1382
        %v1384 = vand.u32 2147483647, %v465
        %vm1385 = vcmp.le.f32.partialorder %v1384, 0.7853982
        %vm1386 = vcmp.lt.s32.totalorder %v465, 0
        %v1387 = vand.u32 %v465, 2139095040
        %v1388 = vshrl.u32 %v1387, 23
        %v1389 = vsub.s32 %v1388, 127
        %v1390 = vand.u32 2147483647, %v465
        %v1391 = vand.u32 %v1390, 8388607
        %v1392 = vor.u32 %v1391, 8388608
        %v1393 = vsub.s32 0, %v1392
        %v1394 = vadd.s32 %v1389, 1
        %vm1395 = vcmp.gt.s32.totalorder %v1394, 0
        %v1396 = vsel %vm1395, %v1394, 0
        %v1397 = vshrl.u32 %v1396, 5
        %v1398 = vand.u32 %v1396, 31
        %v1399 = vsub.s32 32, %v1398
        %v1400 = vshrl.u32 683565275, %v1399
        %v1401 = vshll.u32 683565275, %v1398
        %v1402 = vshrl.u32 2475754826, %v1399
        %v1403 = vor.u32 %v1401, %v1402
        %v1404 = vshll.u32 2475754826, %v1398
        %v1405 = vshrl.u32 2131351028, %v1399
        %v1406 = vor.u32 %v1404, %v1405
        %v1407 = vshll.u32 2131351028, %v1398
        %v1408 = vshrl.u32 2102212464, %v1399
        %v1409 = vor.u32 %v1407, %v1408
        %v1410 = vshll.u32 2102212464, %v1398
        %v1411 = vshrl.u32 920167782, %v1399
        %v1412 = vor.u32 %v1410, %v1411
        %v1413 = vshll.u32 920167782, %v1398
        %v1414 = vshrl.u32 1326507024, %v1399
        %v1415 = vor.u32 %v1413, %v1414
        %vm1416 = vcmp.lt.s32.totalorder %v1397, 1
        %vm1417 = vcmp.lt.s32.totalorder %v1397, 2
        %vm1418 = vcmp.lt.s32.totalorder %v1397, 3
        %vm1419 = vcmp.lt.s32.totalorder %v1397, 4
        %v1420 = vsel %vm1416, %v1400, %v1403
        %v1421 = vsel %vm1419, %v1409, 2102212464
        %v1422 = vsel %vm1418, %v1406, %v1421
        %v1423 = vsel %vm1417, %v1420, %v1422
        %v1424 = vsel %vm1416, %v1403, %v1406
        %v1425 = vsel %vm1419, %v1412, 920167782
        %v1426 = vsel %vm1418, %v1409, %v1425
        %v1427 = vsel %vm1417, %v1424, %v1426
        %v1428 = vsel %vm1416, %v1406, %v1409
        %v1429 = vsel %vm1419, %v1415, 1326507024
        %v1430 = vsel %vm1418, %v1412, %v1429
        %v1431 = vsel %vm1417, %v1428, %v1430
        %v1432 = vshll.u32 %v1392, 8
        %v1433 = vmul.u32.u64.compose %v1432, %v1431
        %v1434 = vextract.low.u32 %v1433
        %v1435 = vextract.high.u32 %v1433
        %v1436 = vmul.u32.u64.compose %v1432, %v1427
        %v1437 = vextract.low.u32 %v1436
        %v1438 = vextract.high.u32 %v1436
        %v1439 = vmul.u32 %v1432, %v1423
        %v1440 = vadd.s32 %v1435, %v1437
        %vm1441 = vc.u32 %v1435, %v1437
        %v1442 = vadd.s32 %v1438, 1
        %v1443 = vsel %vm1441, %v1442, %v1438
        %v1444 = vadd.s32 %v1439, %v1443
        %v1445 = vadd.s32 %v1444, 536870912
        %v1446 = vshrl.u32 %v1445, 30
        %v1447 = vshll.u32 %v1446, 30
        %v1448 = vsub.s32 %v1444, %v1447
        %vm1449 = vcmp.lt.s32.totalorder %v1448, 0
        %v1450 = vsub.s32 0, %v1448
        %v1451 = vsel %vm1449, %v1450, %v1448
        %v1452 = vclz %v1451
        %v1453 = vsub.s32 %v1452, 2
        %vm1454 = vcmp.gt.s32.totalorder 0, %v1453
        %v1455 = vsel %vm1454, 0, %v1453
        %v1456 = vsub.s32 32, %v1455
        %v1457 = vshll.u32 %v1448, %v1455
        %v1458 = vshrl.u32 %v1440, %v1456
        %v1459 = vor.u32 %v1457, %v1458
        %v1460 = vsub.s32 4294967266, %v1455
        %v1461 = vadd.s32 %v1460, 127
        %v1462 = vshll.u32 %v1461, 23
        %v1463 = vor.u32 4788187, %v1462
        %v1464 = vand.u32 2147483647, %v1463
        %v1466 = vcvt.s32.f32 %v1459
        %v1467 = vmul.f32 %v1466, %v1464
        %v1468 = vxor.u32 %v1467, 2147483648
        %v1469 = vsel %vm1386, %v1468, %v1467
        %v1470 = vsub.s32 4, %v1446
        %v1471 = vsel %vm1386, %v1470, %v1446
        %v1472 = vsel %vm1385, %v465, %v1469
        %v1473 = vsel %vm1385, 0, %v1471
        %v1474 = vcosq.f32.pop %v1472
        %v1475 = vsinq.f32.pop %v1472
        %vm1476 = vweird.f32 %v465
        %v1477 = vand.u32 %v1473, 3
        %vm1478 = vcmp.lt.s32.totalorder %v1477, 2
        %vm1479 = vcmp.eq.s32.totalorder %v1477, 0
        %v1480 = vxor.u32 %v1475, 2147483648
        %v1481 = vsel %vm1479, %v1474, %v1480
        %vm1482 = vcmp.eq.s32.totalorder %v1477, 2
        %v1483 = vxor.u32 %v1474, 2147483648
        %v1484 = vsel %vm1482, %v1483, %v1475
        %v1485 = vsel %vm1478, %v1481, %v1484
        %v1486 = vsel %vm1476, nan, %v1485
        %vm1487 = vcmask 64512
        %v1489 = vsel %vm1487, %v198, 0
        %v1492 = vsel %vm1487, %v199, 0
        %v1495 = vsel %vm1487, %v200, 0
        %v1498 = vsel %vm1487, %v201, 0
        %1500 = vmatprep.subr.mxu0 0.0
        %1501 = vmatpush1.msra.mxu0 0.0
        %1502 = vmatprep.subr.mxu0 0.0
        %1503 = vmatpush1.msra.mxu0 0.0
        %1504 = vmatprep.subr.mxu0 0.0
        %1505 = vmatpush1.msra.mxu0 0.0
        %1506 = vmatprep.subr.mxu0 0.0
        %1507 = vmatpush1.msra.mxu0 0.0
        %1508 = vmatprep.subr.mxu0 0.0
        %1509 = vmatpush1.msra.mxu0 0.0
        %1510 = vmatprep.subr.mxu0 0.0
        %1511 = vmatpush1.msra.mxu0 0.0
        %1512 = vmatprep.subr.mxu0 0.0
        %1513 = vmatpush1.msra.mxu0 0.0
        %1514 = vmatprep.subr.mxu0 0.0
        %1515 = vmatpush1.msra.mxu0 0.0
        %1516 = vmatprep.subr.mxu0 0.0
        %1517 = vmatpush1.msra.mxu0 0.0
        %1518 = vmatprep.subr.mxu0 0.0
        %1519 = vmatpush1.msra.mxu0 0.0
        %1520 = vmatprep.subr.mxu0 0.0
        %1521 = vmatpush1.msra.mxu0 0.0
        %1522 = vmatprep.subr.mxu0 0.0
        %1523 = vmatpush1.msra.mxu0 0.0
        %1524 = vmatprep.subr.mxu0 0.0
        %1525 = vmatpush1.msra.mxu0 0.0
        %1526 = vmatprep.subr.mxu0 0.0
        %1527 = vmatpush1.msra.mxu0 0.0
        %1528 = vmatprep.subr.mxu0 0.0
        %1529 = vmatpush1.msra.mxu0 0.0
        %1530 = vmatprep.subr.mxu0 %v656
        %1531 = vmatpush1.msra.mxu0 %v655
        %1532 = vmatprep.subr.mxu0 0.0
        %1533 = vmatpush2.msra.mxu0 0.0
        %1534 = vmatprep.subr.mxu0 0.0
        %1535 = vmatpush2.msra.mxu0 0.0
        %1536 = vmatprep.subr.mxu0 0.0
        %1537 = vmatpush2.msra.mxu0 0.0
        %1538 = vmatprep.subr.mxu0 0.0
        %1539 = vmatpush2.msra.mxu0 0.0
        %1540 = vmatprep.subr.mxu0 0.0
        %1541 = vmatpush2.msra.mxu0 0.0
        %1542 = vmatprep.subr.mxu0 0.0
        %1543 = vmatpush2.msra.mxu0 0.0
        %1544 = vmatprep.subr.mxu0 0.0
        %1545 = vmatpush2.msra.mxu0 0.0
        %1546 = vmatprep.subr.mxu0 0.0
        %1547 = vmatpush2.msra.mxu0 0.0
        %1548 = vmatprep.subr.mxu0 0.0
        %1549 = vmatpush2.msra.mxu0 0.0
        %1550 = vmatprep.subr.mxu0 0.0
        %1551 = vmatpush2.msra.mxu0 0.0
        %1552 = vmatprep.subr.mxu0 0.0
        %1553 = vmatpush2.msra.mxu0 0.0
        %1554 = vmatprep.subr.mxu0 0.0
        %1555 = vmatpush2.msra.mxu0 0.0
        %1556 = vmatprep.subr.mxu0 0.0
        %1557 = vmatpush2.msra.mxu0 0.0
        %1558 = vmatprep.subr.mxu0 0.0
        %1559 = vmatpush2.msra.mxu0 0.0
        %1560 = vmatprep.subr.mxu0 0.0
        %1561 = vmatpush2.msra.mxu0 0.0
        %1562 = vmatprep.subr.mxu0 0.0
        %1563 = vmatpush2.msra.mxu0 0.0
        %1564 = vmatprep.mubr.f32.mxu0 0.0
        %1565 = vmatmul.mubr.f32.gmra.mxu0 %v1489
        %v1566 = vpop.f32.mrf.mxu0
        %v1567 = vadd.f32 0.0, %v1566
        %v1568 = vpop.f32.mrf.mxu0
        %v1569 = vadd.f32 0.0, %v1568
        %1570 = vmatprep.mubr.f32.mxu0 0.0
        %1571 = vmatmul.mubr.f32.gmra.mxu0 %v1492
        %v1572 = vpop.f32.mrf.mxu0
        %v1573 = vadd.f32 0.0, %v1572
        %v1574 = vpop.f32.mrf.mxu0
        %v1575 = vadd.f32 0.0, %v1574
        %1576 = vmatprep.mubr.f32.mxu0 0.0
        %1577 = vmatmul.mubr.f32.gmra.mxu0 %v1495
        %v1578 = vpop.f32.mrf.mxu0
        %v1579 = vadd.f32 0.0, %v1578
        %v1580 = vpop.f32.mrf.mxu0
        %v1581 = vadd.f32 0.0, %v1580
        %1582 = vmatprep.mubr.f32.mxu0 0.0
        %1583 = vmatmul.mubr.f32.gmra.mxu0 %v1498
        %v1584 = vpop.f32.mrf.mxu0
        %v1585 = vadd.f32 0.0, %v1584
        %v1586 = vpop.f32.mrf.mxu0
        %v1587 = vadd.f32 0.0, %v1586
        %1588 = vdwg.mxu0
        %1589 = vmatprep.subr.mxu0 0.0
        %1590 = vmatpush1.msra.mxu0 0.0
        %1591 = vmatprep.subr.mxu0 0.0
        %1592 = vmatpush1.msra.mxu0 0.0
        %1593 = vmatprep.subr.mxu0 0.0
        %1594 = vmatpush1.msra.mxu0 0.0
        %1595 = vmatprep.subr.mxu0 0.0
        %1596 = vmatpush1.msra.mxu0 0.0
        %1597 = vmatprep.subr.mxu0 0.0
        %1598 = vmatpush1.msra.mxu0 0.0
        %1599 = vmatprep.subr.mxu0 0.0
        %1600 = vmatpush1.msra.mxu0 0.0
        %1601 = vmatprep.subr.mxu0 0.0
        %1602 = vmatpush1.msra.mxu0 0.0
        %1603 = vmatprep.subr.mxu0 0.0
        %1604 = vmatpush1.msra.mxu0 0.0
        %1605 = vmatprep.subr.mxu0 0.0
        %1606 = vmatpush1.msra.mxu0 0.0
        %1607 = vmatprep.subr.mxu0 0.0
        %1608 = vmatpush1.msra.mxu0 0.0
        %1609 = vmatprep.subr.mxu0 0.0
        %1610 = vmatpush1.msra.mxu0 0.0
        %1611 = vmatprep.subr.mxu0 0.0
        %1612 = vmatpush1.msra.mxu0 0.0
        %1613 = vmatprep.subr.mxu0 0.0
        %1614 = vmatpush1.msra.mxu0 0.0
        %1615 = vmatprep.subr.mxu0 0.0
        %1616 = vmatpush1.msra.mxu0 0.0
        %1617 = vmatprep.subr.mxu0 0.0
        %1618 = vmatpush1.msra.mxu0 0.0
        %1619 = vmatprep.subr.mxu0 %v658
        %1620 = vmatpush1.msra.mxu0 %v657
        %1621 = vmatprep.subr.mxu0 0.0
        %1622 = vmatpush2.msra.mxu0 0.0
        %1623 = vmatprep.subr.mxu0 0.0
        %1624 = vmatpush2.msra.mxu0 0.0
        %1625 = vmatprep.subr.mxu0 0.0
        %1626 = vmatpush2.msra.mxu0 0.0
        %1627 = vmatprep.subr.mxu0 0.0
        %1628 = vmatpush2.msra.mxu0 0.0
        %1629 = vmatprep.subr.mxu0 0.0
        %1630 = vmatpush2.msra.mxu0 0.0
        %1631 = vmatprep.subr.mxu0 0.0
        %1632 = vmatpush2.msra.mxu0 0.0
        %1633 = vmatprep.subr.mxu0 0.0
        %1634 = vmatpush2.msra.mxu0 0.0
        %1635 = vmatprep.subr.mxu0 0.0
        %1636 = vmatpush2.msra.mxu0 0.0
        %1637 = vmatprep.subr.mxu0 0.0
        %1638 = vmatpush2.msra.mxu0 0.0
        %1639 = vmatprep.subr.mxu0 0.0
        %1640 = vmatpush2.msra.mxu0 0.0
        %1641 = vmatprep.subr.mxu0 0.0
        %1642 = vmatpush2.msra.mxu0 0.0
        %1643 = vmatprep.subr.mxu0 0.0
        %1644 = vmatpush2.msra.mxu0 0.0
        %1645 = vmatprep.subr.mxu0 0.0
        %1646 = vmatpush2.msra.mxu0 0.0
        %1647 = vmatprep.subr.mxu0 0.0
        %1648 = vmatpush2.msra.mxu0 0.0
        %1649 = vmatprep.subr.mxu0 0.0
        %1650 = vmatpush2.msra.mxu0 0.0
        %1651 = vmatprep.subr.mxu0 0.0
        %1652 = vmatpush2.msra.mxu0 0.0
        %1653 = vmatprep.mubr.f32.mxu0 0.0
        %1654 = vmatmul.mubr.f32.gmra.mxu0 %v1489
        %v1655 = vpop.f32.mrf.mxu0
        %v1656 = vadd.f32 0.0, %v1655
        %v1657 = vpop.f32.mrf.mxu0
        %v1658 = vadd.f32 0.0, %v1657
        %1659 = vmatprep.mubr.f32.mxu0 0.0
        %1660 = vmatmul.mubr.f32.gmra.mxu0 %v1492
        %v1661 = vpop.f32.mrf.mxu0
        %v1662 = vadd.f32 0.0, %v1661
        %v1663 = vpop.f32.mrf.mxu0
        %v1664 = vadd.f32 0.0, %v1663
        %1665 = vmatprep.mubr.f32.mxu0 0.0
        %1666 = vmatmul.mubr.f32.gmra.mxu0 %v1495
        %v1667 = vpop.f32.mrf.mxu0
        %v1668 = vadd.f32 0.0, %v1667
        %v1669 = vpop.f32.mrf.mxu0
        %v1670 = vadd.f32 0.0, %v1669
        %1671 = vmatprep.mubr.f32.mxu0 0.0
        %1672 = vmatmul.mubr.f32.gmra.mxu0 %v1498
        %v1673 = vpop.f32.mrf.mxu0
        %v1674 = vadd.f32 0.0, %v1673
        %v1675 = vpop.f32.mrf.mxu0
        %v1676 = vadd.f32 0.0, %v1675
        %1677 = vdwg.mxu0
        %v1679 = vsel %vm1487, %v194, 0
        %v1682 = vsel %vm1487, %v195, 0
        %v1685 = vsel %vm1487, %v196, 0
        %v1688 = vsel %vm1487, %v197, 0
        %1690 = vmatprep.subr.mxu0 0.0
        %1691 = vmatpush1.msra.mxu0 0.0
        %1692 = vmatprep.subr.mxu0 0.0
        %1693 = vmatpush1.msra.mxu0 0.0
        %1694 = vmatprep.subr.mxu0 0.0
        %1695 = vmatpush1.msra.mxu0 0.0
        %1696 = vmatprep.subr.mxu0 0.0
        %1697 = vmatpush1.msra.mxu0 0.0
        %1698 = vmatprep.subr.mxu0 0.0
        %1699 = vmatpush1.msra.mxu0 0.0
        %1700 = vmatprep.subr.mxu0 0.0
        %1701 = vmatpush1.msra.mxu0 0.0
        %1702 = vmatprep.subr.mxu0 0.0
        %1703 = vmatpush1.msra.mxu0 0.0
        %1704 = vmatprep.subr.mxu0 0.0
        %1705 = vmatpush1.msra.mxu0 0.0
        %1706 = vmatprep.subr.mxu0 0.0
        %1707 = vmatpush1.msra.mxu0 0.0
        %1708 = vmatprep.subr.mxu0 0.0
        %1709 = vmatpush1.msra.mxu0 0.0
        %1710 = vmatprep.subr.mxu0 0.0
        %1711 = vmatpush1.msra.mxu0 0.0
        %1712 = vmatprep.subr.mxu0 0.0
        %1713 = vmatpush1.msra.mxu0 0.0
        %1714 = vmatprep.subr.mxu0 0.0
        %1715 = vmatpush1.msra.mxu0 0.0
        %1716 = vmatprep.subr.mxu0 0.0
        %1717 = vmatpush1.msra.mxu0 0.0
        %1718 = vmatprep.subr.mxu0 0.0
        %1719 = vmatpush1.msra.mxu0 0.0
        %1720 = vmatprep.subr.mxu0 %v652
        %1721 = vmatpush1.msra.mxu0 %v651
        %1722 = vmatprep.subr.mxu0 0.0
        %1723 = vmatpush2.msra.mxu0 0.0
        %1724 = vmatprep.subr.mxu0 0.0
        %1725 = vmatpush2.msra.mxu0 0.0
        %1726 = vmatprep.subr.mxu0 0.0
        %1727 = vmatpush2.msra.mxu0 0.0
        %1728 = vmatprep.subr.mxu0 0.0
        %1729 = vmatpush2.msra.mxu0 0.0
        %1730 = vmatprep.subr.mxu0 0.0
        %1731 = vmatpush2.msra.mxu0 0.0
        %1732 = vmatprep.subr.mxu0 0.0
        %1733 = vmatpush2.msra.mxu0 0.0
        %1734 = vmatprep.subr.mxu0 0.0
        %1735 = vmatpush2.msra.mxu0 0.0
        %1736 = vmatprep.subr.mxu0 0.0
        %1737 = vmatpush2.msra.mxu0 0.0
        %1738 = vmatprep.subr.mxu0 0.0
        %1739 = vmatpush2.msra.mxu0 0.0
        %1740 = vmatprep.subr.mxu0 0.0
        %1741 = vmatpush2.msra.mxu0 0.0
        %1742 = vmatprep.subr.mxu0 0.0
        %1743 = vmatpush2.msra.mxu0 0.0
        %1744 = vmatprep.subr.mxu0 0.0
        %1745 = vmatpush2.msra.mxu0 0.0
        %1746 = vmatprep.subr.mxu0 0.0
        %1747 = vmatpush2.msra.mxu0 0.0
        %1748 = vmatprep.subr.mxu0 0.0
        %1749 = vmatpush2.msra.mxu0 0.0
        %1750 = vmatprep.subr.mxu0 0.0
        %1751 = vmatpush2.msra.mxu0 0.0
        %1752 = vmatprep.subr.mxu0 0.0
        %1753 = vmatpush2.msra.mxu0 0.0
        %1754 = vmatprep.mubr.f32.mxu0 0.0
        %1755 = vmatmul.mubr.f32.gmra.mxu0 %v1679
        %v1756 = vpop.f32.mrf.mxu0
        %v1757 = vadd.f32 %v1567, %v1756
        %v1758 = vpop.f32.mrf.mxu0
        %v1759 = vadd.f32 %v1569, %v1758
        %1760 = vmatprep.mubr.f32.mxu0 0.0
        %1761 = vmatmul.mubr.f32.gmra.mxu0 %v1682
        %v1762 = vpop.f32.mrf.mxu0
        %v1763 = vadd.f32 %v1573, %v1762
        %v1764 = vpop.f32.mrf.mxu0
        %v1765 = vadd.f32 %v1575, %v1764
        %1766 = vmatprep.mubr.f32.mxu0 0.0
        %1767 = vmatmul.mubr.f32.gmra.mxu0 %v1685
        %v1768 = vpop.f32.mrf.mxu0
        %v1769 = vadd.f32 %v1579, %v1768
        %v1770 = vpop.f32.mrf.mxu0
        %v1771 = vadd.f32 %v1581, %v1770
        %1772 = vmatprep.mubr.f32.mxu0 0.0
        %1773 = vmatmul.mubr.f32.gmra.mxu0 %v1688
        %v1774 = vpop.f32.mrf.mxu0
        %v1775 = vadd.f32 %v1585, %v1774
        %v1776 = vpop.f32.mrf.mxu0
        %v1777 = vadd.f32 %v1587, %v1776
        %1778 = vdwg.mxu0
        %1779 = vmatprep.subr.mxu0 0.0
        %1780 = vmatpush1.msra.mxu0 0.0
        %1781 = vmatprep.subr.mxu0 0.0
        %1782 = vmatpush1.msra.mxu0 0.0
        %1783 = vmatprep.subr.mxu0 0.0
        %1784 = vmatpush1.msra.mxu0 0.0
        %1785 = vmatprep.subr.mxu0 0.0
        %1786 = vmatpush1.msra.mxu0 0.0
        %1787 = vmatprep.subr.mxu0 0.0
        %1788 = vmatpush1.msra.mxu0 0.0
        %1789 = vmatprep.subr.mxu0 0.0
        %1790 = vmatpush1.msra.mxu0 0.0
        %1791 = vmatprep.subr.mxu0 0.0
        %1792 = vmatpush1.msra.mxu0 0.0
        %1793 = vmatprep.subr.mxu0 0.0
        %1794 = vmatpush1.msra.mxu0 0.0
        %1795 = vmatprep.subr.mxu0 0.0
        %1796 = vmatpush1.msra.mxu0 0.0
        %1797 = vmatprep.subr.mxu0 0.0
        %1798 = vmatpush1.msra.mxu0 0.0
        %1799 = vmatprep.subr.mxu0 0.0
        %1800 = vmatpush1.msra.mxu0 0.0
        %1801 = vmatprep.subr.mxu0 0.0
        %1802 = vmatpush1.msra.mxu0 0.0
        %1803 = vmatprep.subr.mxu0 0.0
        %1804 = vmatpush1.msra.mxu0 0.0
        %1805 = vmatprep.subr.mxu0 0.0
        %1806 = vmatpush1.msra.mxu0 0.0
        %1807 = vmatprep.subr.mxu0 0.0
        %1808 = vmatpush1.msra.mxu0 0.0
        %1809 = vmatprep.subr.mxu0 %v654
        %1810 = vmatpush1.msra.mxu0 %v653
        %1811 = vmatprep.subr.mxu0 0.0
        %1812 = vmatpush2.msra.mxu0 0.0
        %1813 = vmatprep.subr.mxu0 0.0
        %1814 = vmatpush2.msra.mxu0 0.0
        %1815 = vmatprep.subr.mxu0 0.0
        %1816 = vmatpush2.msra.mxu0 0.0
        %1817 = vmatprep.subr.mxu0 0.0
        %1818 = vmatpush2.msra.mxu0 0.0
        %1819 = vmatprep.subr.mxu0 0.0
        %1820 = vmatpush2.msra.mxu0 0.0
        %1821 = vmatprep.subr.mxu0 0.0
        %1822 = vmatpush2.msra.mxu0 0.0
        %1823 = vmatprep.subr.mxu0 0.0
        %1824 = vmatpush2.msra.mxu0 0.0
        %1825 = vmatprep.subr.mxu0 0.0
        %1826 = vmatpush2.msra.mxu0 0.0
        %1827 = vmatprep.subr.mxu0 0.0
        %1828 = vmatpush2.msra.mxu0 0.0
        %1829 = vmatprep.subr.mxu0 0.0
        %1830 = vmatpush2.msra.mxu0 0.0
        %1831 = vmatprep.subr.mxu0 0.0
        %1832 = vmatpush2.msra.mxu0 0.0
        %1833 = vmatprep.subr.mxu0 0.0
        %1834 = vmatpush2.msra.mxu0 0.0
        %1835 = vmatprep.subr.mxu0 0.0
        %1836 = vmatpush2.msra.mxu0 0.0
        %1837 = vmatprep.subr.mxu0 0.0
        %1838 = vmatpush2.msra.mxu0 0.0
        %1839 = vmatprep.subr.mxu0 0.0
        %1840 = vmatpush2.msra.mxu0 0.0
        %1841 = vmatprep.subr.mxu0 0.0
        %1842 = vmatpush2.msra.mxu0 0.0
        %1843 = vmatprep.mubr.f32.mxu0 0.0
        %1844 = vmatmul.mubr.f32.gmra.mxu0 %v1679
        %v1845 = vpop.f32.mrf.mxu0
        %v1846 = vadd.f32 %v1656, %v1845
        %v1847 = vpop.f32.mrf.mxu0
        %v1848 = vadd.f32 %v1658, %v1847
        %1849 = vmatprep.mubr.f32.mxu0 0.0
        %1850 = vmatmul.mubr.f32.gmra.mxu0 %v1682
        %v1851 = vpop.f32.mrf.mxu0
        %v1852 = vadd.f32 %v1662, %v1851
        %v1853 = vpop.f32.mrf.mxu0
        %v1854 = vadd.f32 %v1664, %v1853
        %1855 = vmatprep.mubr.f32.mxu0 0.0
        %1856 = vmatmul.mubr.f32.gmra.mxu0 %v1685
        %v1857 = vpop.f32.mrf.mxu0
        %v1858 = vadd.f32 %v1668, %v1857
        %v1859 = vpop.f32.mrf.mxu0
        %v1860 = vadd.f32 %v1670, %v1859
        %1861 = vmatprep.mubr.f32.mxu0 0.0
        %1862 = vmatmul.mubr.f32.gmra.mxu0 %v1688
        %v1863 = vpop.f32.mrf.mxu0
        %v1864 = vadd.f32 %v1674, %v1863
        %v1865 = vpop.f32.mrf.mxu0
        %v1866 = vadd.f32 %v1676, %v1865
        %1867 = vdwg.mxu0
        %v1869 = vsel %vm1487, %v202, 0
        %v1872 = vsel %vm1487, %v203, 0
        %v1875 = vsel %vm1487, %v204, 0
        %v1878 = vsel %vm1487, %v205, 0
        %1880 = vmatprep.subr.mxu0 0.0
        %1881 = vmatpush1.msra.mxu0 0.0
        %1882 = vmatprep.subr.mxu0 0.0
        %1883 = vmatpush1.msra.mxu0 0.0
        %1884 = vmatprep.subr.mxu0 0.0
        %1885 = vmatpush1.msra.mxu0 0.0
        %1886 = vmatprep.subr.mxu0 0.0
        %1887 = vmatpush1.msra.mxu0 0.0
        %1888 = vmatprep.subr.mxu0 0.0
        %1889 = vmatpush1.msra.mxu0 0.0
        %1890 = vmatprep.subr.mxu0 0.0
        %1891 = vmatpush1.msra.mxu0 0.0
        %1892 = vmatprep.subr.mxu0 0.0
        %1893 = vmatpush1.msra.mxu0 0.0
        %1894 = vmatprep.subr.mxu0 0.0
        %1895 = vmatpush1.msra.mxu0 0.0
        %1896 = vmatprep.subr.mxu0 0.0
        %1897 = vmatpush1.msra.mxu0 0.0
        %1898 = vmatprep.subr.mxu0 0.0
        %1899 = vmatpush1.msra.mxu0 0.0
        %1900 = vmatprep.subr.mxu0 0.0
        %1901 = vmatpush1.msra.mxu0 0.0
        %1902 = vmatprep.subr.mxu0 0.0
        %1903 = vmatpush1.msra.mxu0 0.0
        %1904 = vmatprep.subr.mxu0 0.0
        %1905 = vmatpush1.msra.mxu0 0.0
        %1906 = vmatprep.subr.mxu0 0.0
        %1907 = vmatpush1.msra.mxu0 0.0
        %1908 = vmatprep.subr.mxu0 0.0
        %1909 = vmatpush1.msra.mxu0 0.0
        %1910 = vmatprep.subr.mxu0 %v866
        %1911 = vmatpush1.msra.mxu0 %v762
        %1912 = vmatprep.subr.mxu0 0.0
        %1913 = vmatpush2.msra.mxu0 0.0
        %1914 = vmatprep.subr.mxu0 0.0
        %1915 = vmatpush2.msra.mxu0 0.0
        %1916 = vmatprep.subr.mxu0 0.0
        %1917 = vmatpush2.msra.mxu0 0.0
        %1918 = vmatprep.subr.mxu0 0.0
        %1919 = vmatpush2.msra.mxu0 0.0
        %1920 = vmatprep.subr.mxu0 0.0
        %1921 = vmatpush2.msra.mxu0 0.0
        %1922 = vmatprep.subr.mxu0 0.0
        %1923 = vmatpush2.msra.mxu0 0.0
        %1924 = vmatprep.subr.mxu0 0.0
        %1925 = vmatpush2.msra.mxu0 0.0
        %1926 = vmatprep.subr.mxu0 0.0
        %1927 = vmatpush2.msra.mxu0 0.0
        %1928 = vmatprep.subr.mxu0 0.0
        %1929 = vmatpush2.msra.mxu0 0.0
        %1930 = vmatprep.subr.mxu0 0.0
        %1931 = vmatpush2.msra.mxu0 0.0
        %1932 = vmatprep.subr.mxu0 0.0
        %1933 = vmatpush2.msra.mxu0 0.0
        %1934 = vmatprep.subr.mxu0 0.0
        %1935 = vmatpush2.msra.mxu0 0.0
        %1936 = vmatprep.subr.mxu0 0.0
        %1937 = vmatpush2.msra.mxu0 0.0
        %1938 = vmatprep.subr.mxu0 0.0
        %1939 = vmatpush2.msra.mxu0 0.0
        %1940 = vmatprep.subr.mxu0 0.0
        %1941 = vmatpush2.msra.mxu0 0.0
        %1942 = vmatprep.subr.mxu0 0.0
        %1943 = vmatpush2.msra.mxu0 0.0
        %1944 = vmatprep.mubr.f32.mxu0 0.0
        %1945 = vmatmul.mubr.f32.gmra.mxu0 %v1869
        %v1946 = vpop.f32.mrf.mxu0
        %v1947 = vadd.f32 0.0, %v1946
        %v1948 = vpop.f32.mrf.mxu0
        %v1949 = vadd.f32 0.0, %v1948
        %1950 = vmatprep.mubr.f32.mxu0 0.0
        %1951 = vmatmul.mubr.f32.gmra.mxu0 %v1872
        %v1952 = vpop.f32.mrf.mxu0
        %v1953 = vadd.f32 0.0, %v1952
        %v1954 = vpop.f32.mrf.mxu0
        %v1955 = vadd.f32 0.0, %v1954
        %1956 = vmatprep.mubr.f32.mxu0 0.0
        %1957 = vmatmul.mubr.f32.gmra.mxu0 %v1875
        %v1958 = vpop.f32.mrf.mxu0
        %v1959 = vadd.f32 0.0, %v1958
        %v1960 = vpop.f32.mrf.mxu0
        %v1961 = vadd.f32 0.0, %v1960
        %1962 = vmatprep.mubr.f32.mxu0 0.0
        %1963 = vmatmul.mubr.f32.gmra.mxu0 %v1878
        %v1964 = vpop.f32.mrf.mxu0
        %v1965 = vadd.f32 0.0, %v1964
        %v1966 = vpop.f32.mrf.mxu0
        %v1967 = vadd.f32 0.0, %v1966
        %1968 = vdwg.mxu0
        %1969 = vmatprep.subr.mxu0 0.0
        %1970 = vmatpush1.msra.mxu0 0.0
        %1971 = vmatprep.subr.mxu0 0.0
        %1972 = vmatpush1.msra.mxu0 0.0
        %1973 = vmatprep.subr.mxu0 0.0
        %1974 = vmatpush1.msra.mxu0 0.0
        %1975 = vmatprep.subr.mxu0 0.0
        %1976 = vmatpush1.msra.mxu0 0.0
        %1977 = vmatprep.subr.mxu0 0.0
        %1978 = vmatpush1.msra.mxu0 0.0
        %1979 = vmatprep.subr.mxu0 0.0
        %1980 = vmatpush1.msra.mxu0 0.0
        %1981 = vmatprep.subr.mxu0 0.0
        %1982 = vmatpush1.msra.mxu0 0.0
        %1983 = vmatprep.subr.mxu0 0.0
        %1984 = vmatpush1.msra.mxu0 0.0
        %1985 = vmatprep.subr.mxu0 0.0
        %1986 = vmatpush1.msra.mxu0 0.0
        %1987 = vmatprep.subr.mxu0 0.0
        %1988 = vmatpush1.msra.mxu0 0.0
        %1989 = vmatprep.subr.mxu0 0.0
        %1990 = vmatpush1.msra.mxu0 0.0
        %1991 = vmatprep.subr.mxu0 0.0
        %1992 = vmatpush1.msra.mxu0 0.0
        %1993 = vmatprep.subr.mxu0 0.0
        %1994 = vmatpush1.msra.mxu0 0.0
        %1995 = vmatprep.subr.mxu0 0.0
        %1996 = vmatpush1.msra.mxu0 0.0
        %1997 = vmatprep.subr.mxu0 0.0
        %1998 = vmatpush1.msra.mxu0 0.0
        %1999 = vmatprep.subr.mxu0 %v1074
        %2000 = vmatpush1.msra.mxu0 %v970
        %2001 = vmatprep.subr.mxu0 0.0
        %2002 = vmatpush2.msra.mxu0 0.0
        %2003 = vmatprep.subr.mxu0 0.0
        %2004 = vmatpush2.msra.mxu0 0.0
        %2005 = vmatprep.subr.mxu0 0.0
        %2006 = vmatpush2.msra.mxu0 0.0
        %2007 = vmatprep.subr.mxu0 0.0
        %2008 = vmatpush2.msra.mxu0 0.0
        %2009 = vmatprep.subr.mxu0 0.0
        %2010 = vmatpush2.msra.mxu0 0.0
        %2011 = vmatprep.subr.mxu0 0.0
        %2012 = vmatpush2.msra.mxu0 0.0
        %2013 = vmatprep.subr.mxu0 0.0
        %2014 = vmatpush2.msra.mxu0 0.0
        %2015 = vmatprep.subr.mxu0 0.0
        %2016 = vmatpush2.msra.mxu0 0.0
        %2017 = vmatprep.subr.mxu0 0.0
        %2018 = vmatpush2.msra.mxu0 0.0
        %2019 = vmatprep.subr.mxu0 0.0
        %2020 = vmatpush2.msra.mxu0 0.0
        %2021 = vmatprep.subr.mxu0 0.0
        %2022 = vmatpush2.msra.mxu0 0.0
        %2023 = vmatprep.subr.mxu0 0.0
        %2024 = vmatpush2.msra.mxu0 0.0
        %2025 = vmatprep.subr.mxu0 0.0
        %2026 = vmatpush2.msra.mxu0 0.0
        %2027 = vmatprep.subr.mxu0 0.0
        %2028 = vmatpush2.msra.mxu0 0.0
        %2029 = vmatprep.subr.mxu0 0.0
        %2030 = vmatpush2.msra.mxu0 0.0
        %2031 = vmatprep.subr.mxu0 0.0
        %2032 = vmatpush2.msra.mxu0 0.0
        %2033 = vmatprep.mubr.f32.mxu0 0.0
        %2034 = vmatmul.mubr.f32.gmra.mxu0 %v1869
        %v2035 = vpop.f32.mrf.mxu0
        %v2036 = vadd.f32 0.0, %v2035
        %v2037 = vpop.f32.mrf.mxu0
        %v2038 = vadd.f32 0.0, %v2037
        %2039 = vmatprep.mubr.f32.mxu0 0.0
        %2040 = vmatmul.mubr.f32.gmra.mxu0 %v1872
        %v2041 = vpop.f32.mrf.mxu0
        %v2042 = vadd.f32 0.0, %v2041
        %v2043 = vpop.f32.mrf.mxu0
        %v2044 = vadd.f32 0.0, %v2043
        %2045 = vmatprep.mubr.f32.mxu0 0.0
        %2046 = vmatmul.mubr.f32.gmra.mxu0 %v1875
        %v2047 = vpop.f32.mrf.mxu0
        %v2048 = vadd.f32 0.0, %v2047
        %v2049 = vpop.f32.mrf.mxu0
        %v2050 = vadd.f32 0.0, %v2049
        %2051 = vmatprep.mubr.f32.mxu0 0.0
        %2052 = vmatmul.mubr.f32.gmra.mxu0 %v1878
        %v2053 = vpop.f32.mrf.mxu0
        %v2054 = vadd.f32 0.0, %v2053
        %v2055 = vpop.f32.mrf.mxu0
        %v2056 = vadd.f32 0.0, %v2055
        %2057 = vdwg.mxu0
        %v2058 = vadd.f32 %v1757, %v1947
        %v2059 = vadd.f32 %v1759, %v1949
        %v2060 = vadd.f32 %v1846, %v2036
        %v2061 = vadd.f32 %v1848, %v2038
        %v2062 = vadd.f32 %v1763, %v1953
        %v2063 = vadd.f32 %v1765, %v1955
        %v2064 = vadd.f32 %v1852, %v2042
        %v2065 = vadd.f32 %v1854, %v2044
        %v2066 = vadd.f32 %v1769, %v1959
        %v2067 = vadd.f32 %v1771, %v1961
        %v2068 = vadd.f32 %v1858, %v2048
        %v2069 = vadd.f32 %v1860, %v2050
        %v2070 = vadd.f32 %v1775, %v1965
        %v2071 = vadd.f32 %v1777, %v1967
        %v2072 = vadd.f32 %v1864, %v2054
        %v2073 = vadd.f32 %v1866, %v2056
        %v2075 = vsel %vm1487, %v206, 0
        %v2078 = vsel %vm1487, %v207, 0
        %v2081 = vsel %vm1487, %v208, 0
        %v2084 = vsel %vm1487, %v209, 0
        %2086 = vmatprep.subr.mxu0 0.0
        %2087 = vmatpush1.msra.mxu0 0.0
        %2088 = vmatprep.subr.mxu0 0.0
        %2089 = vmatpush1.msra.mxu0 0.0
        %2090 = vmatprep.subr.mxu0 0.0
        %2091 = vmatpush1.msra.mxu0 0.0
        %2092 = vmatprep.subr.mxu0 0.0
        %2093 = vmatpush1.msra.mxu0 0.0
        %2094 = vmatprep.subr.mxu0 0.0
        %2095 = vmatpush1.msra.mxu0 0.0
        %2096 = vmatprep.subr.mxu0 0.0
        %2097 = vmatpush1.msra.mxu0 0.0
        %2098 = vmatprep.subr.mxu0 0.0
        %2099 = vmatpush1.msra.mxu0 0.0
        %2100 = vmatprep.subr.mxu0 0.0
        %2101 = vmatpush1.msra.mxu0 0.0
        %2102 = vmatprep.subr.mxu0 0.0
        %2103 = vmatpush1.msra.mxu0 0.0
        %2104 = vmatprep.subr.mxu0 0.0
        %2105 = vmatpush1.msra.mxu0 0.0
        %2106 = vmatprep.subr.mxu0 0.0
        %2107 = vmatpush1.msra.mxu0 0.0
        %2108 = vmatprep.subr.mxu0 0.0
        %2109 = vmatpush1.msra.mxu0 0.0
        %2110 = vmatprep.subr.mxu0 0.0
        %2111 = vmatpush1.msra.mxu0 0.0
        %2112 = vmatprep.subr.mxu0 0.0
        %2113 = vmatpush1.msra.mxu0 0.0
        %2114 = vmatprep.subr.mxu0 0.0
        %2115 = vmatpush1.msra.mxu0 0.0
        %2116 = vmatprep.subr.mxu0 %v1280
        %2117 = vmatpush1.msra.mxu0 %v1177
        %2118 = vmatprep.subr.mxu0 0.0
        %2119 = vmatpush2.msra.mxu0 0.0
        %2120 = vmatprep.subr.mxu0 0.0
        %2121 = vmatpush2.msra.mxu0 0.0
        %2122 = vmatprep.subr.mxu0 0.0
        %2123 = vmatpush2.msra.mxu0 0.0
        %2124 = vmatprep.subr.mxu0 0.0
        %2125 = vmatpush2.msra.mxu0 0.0
        %2126 = vmatprep.subr.mxu0 0.0
        %2127 = vmatpush2.msra.mxu0 0.0
        %2128 = vmatprep.subr.mxu0 0.0
        %2129 = vmatpush2.msra.mxu0 0.0
        %2130 = vmatprep.subr.mxu0 0.0
        %2131 = vmatpush2.msra.mxu0 0.0
        %2132 = vmatprep.subr.mxu0 0.0
        %2133 = vmatpush2.msra.mxu0 0.0
        %2134 = vmatprep.subr.mxu0 0.0
        %2135 = vmatpush2.msra.mxu0 0.0
        %2136 = vmatprep.subr.mxu0 0.0
        %2137 = vmatpush2.msra.mxu0 0.0
        %2138 = vmatprep.subr.mxu0 0.0
        %2139 = vmatpush2.msra.mxu0 0.0
        %2140 = vmatprep.subr.mxu0 0.0
        %2141 = vmatpush2.msra.mxu0 0.0
        %2142 = vmatprep.subr.mxu0 0.0
        %2143 = vmatpush2.msra.mxu0 0.0
        %2144 = vmatprep.subr.mxu0 0.0
        %2145 = vmatpush2.msra.mxu0 0.0
        %2146 = vmatprep.subr.mxu0 0.0
        %2147 = vmatpush2.msra.mxu0 0.0
        %2148 = vmatprep.subr.mxu0 0.0
        %2149 = vmatpush2.msra.mxu0 0.0
        %2150 = vmatprep.mubr.f32.mxu0 0.0
        %2151 = vmatmul.mubr.f32.gmra.mxu0 %v2075
        %v2152 = vpop.f32.mrf.mxu0
        %v2153 = vadd.f32 0.0, %v2152
        %v2154 = vpop.f32.mrf.mxu0
        %v2155 = vadd.f32 0.0, %v2154
        %2156 = vmatprep.mubr.f32.mxu0 0.0
        %2157 = vmatmul.mubr.f32.gmra.mxu0 %v2078
        %v2158 = vpop.f32.mrf.mxu0
        %v2159 = vadd.f32 0.0, %v2158
        %v2160 = vpop.f32.mrf.mxu0
        %v2161 = vadd.f32 0.0, %v2160
        %2162 = vmatprep.mubr.f32.mxu0 0.0
        %2163 = vmatmul.mubr.f32.gmra.mxu0 %v2081
        %v2164 = vpop.f32.mrf.mxu0
        %v2165 = vadd.f32 0.0, %v2164
        %v2166 = vpop.f32.mrf.mxu0
        %v2167 = vadd.f32 0.0, %v2166
        %2168 = vmatprep.mubr.f32.mxu0 0.0
        %2169 = vmatmul.mubr.f32.gmra.mxu0 %v2084
        %v2170 = vpop.f32.mrf.mxu0
        %v2171 = vadd.f32 0.0, %v2170
        %v2172 = vpop.f32.mrf.mxu0
        %v2173 = vadd.f32 0.0, %v2172
        %2174 = vdwg.mxu0
        %2175 = vmatprep.subr.mxu0 0.0
        %2176 = vmatpush1.msra.mxu0 0.0
        %2177 = vmatprep.subr.mxu0 0.0
        %2178 = vmatpush1.msra.mxu0 0.0
        %2179 = vmatprep.subr.mxu0 0.0
        %2180 = vmatpush1.msra.mxu0 0.0
        %2181 = vmatprep.subr.mxu0 0.0
        %2182 = vmatpush1.msra.mxu0 0.0
        %2183 = vmatprep.subr.mxu0 0.0
        %2184 = vmatpush1.msra.mxu0 0.0
        %2185 = vmatprep.subr.mxu0 0.0
        %2186 = vmatpush1.msra.mxu0 0.0
        %2187 = vmatprep.subr.mxu0 0.0
        %2188 = vmatpush1.msra.mxu0 0.0
        %2189 = vmatprep.subr.mxu0 0.0
        %2190 = vmatpush1.msra.mxu0 0.0
        %2191 = vmatprep.subr.mxu0 0.0
        %2192 = vmatpush1.msra.mxu0 0.0
        %2193 = vmatprep.subr.mxu0 0.0
        %2194 = vmatpush1.msra.mxu0 0.0
        %2195 = vmatprep.subr.mxu0 0.0
        %2196 = vmatpush1.msra.mxu0 0.0
        %2197 = vmatprep.subr.mxu0 0.0
        %2198 = vmatpush1.msra.mxu0 0.0
        %2199 = vmatprep.subr.mxu0 0.0
        %2200 = vmatpush1.msra.mxu0 0.0
        %2201 = vmatprep.subr.mxu0 0.0
        %2202 = vmatpush1.msra.mxu0 0.0
        %2203 = vmatprep.subr.mxu0 0.0
        %2204 = vmatpush1.msra.mxu0 0.0
        %2205 = vmatprep.subr.mxu0 %v1486
        %2206 = vmatpush1.msra.mxu0 %v1383
        %2207 = vmatprep.subr.mxu0 0.0
        %2208 = vmatpush2.msra.mxu0 0.0
        %2209 = vmatprep.subr.mxu0 0.0
        %2210 = vmatpush2.msra.mxu0 0.0
        %2211 = vmatprep.subr.mxu0 0.0
        %2212 = vmatpush2.msra.mxu0 0.0
        %2213 = vmatprep.subr.mxu0 0.0
        %2214 = vmatpush2.msra.mxu0 0.0
        %2215 = vmatprep.subr.mxu0 0.0
        %2216 = vmatpush2.msra.mxu0 0.0
        %2217 = vmatprep.subr.mxu0 0.0
        %2218 = vmatpush2.msra.mxu0 0.0
        %2219 = vmatprep.subr.mxu0 0.0
        %2220 = vmatpush2.msra.mxu0 0.0
        %2221 = vmatprep.subr.mxu0 0.0
        %2222 = vmatpush2.msra.mxu0 0.0
        %2223 = vmatprep.subr.mxu0 0.0
        %2224 = vmatpush2.msra.mxu0 0.0
        %2225 = vmatprep.subr.mxu0 0.0
        %2226 = vmatpush2.msra.mxu0 0.0
        %2227 = vmatprep.subr.mxu0 0.0
        %2228 = vmatpush2.msra.mxu0 0.0
        %2229 = vmatprep.subr.mxu0 0.0
        %2230 = vmatpush2.msra.mxu0 0.0
        %2231 = vmatprep.subr.mxu0 0.0
        %2232 = vmatpush2.msra.mxu0 0.0
        %2233 = vmatprep.subr.mxu0 0.0
        %2234 = vmatpush2.msra.mxu0 0.0
        %2235 = vmatprep.subr.mxu0 0.0
        %2236 = vmatpush2.msra.mxu0 0.0
        %2237 = vmatprep.subr.mxu0 0.0
        %2238 = vmatpush2.msra.mxu0 0.0
        %2239 = vmatprep.mubr.f32.mxu0 0.0
        %2240 = vmatmul.mubr.f32.gmra.mxu0 %v2075
        %v2241 = vpop.f32.mrf.mxu0
        %v2242 = vadd.f32 0.0, %v2241
        %v2243 = vpop.f32.mrf.mxu0
        %v2244 = vadd.f32 0.0, %v2243
        %2245 = vmatprep.mubr.f32.mxu0 0.0
        %2246 = vmatmul.mubr.f32.gmra.mxu0 %v2078
        %v2247 = vpop.f32.mrf.mxu0
        %v2248 = vadd.f32 0.0, %v2247
        %v2249 = vpop.f32.mrf.mxu0
        %v2250 = vadd.f32 0.0, %v2249
        %2251 = vmatprep.mubr.f32.mxu0 0.0
        %2252 = vmatmul.mubr.f32.gmra.mxu0 %v2081
        %v2253 = vpop.f32.mrf.mxu0
        %v2254 = vadd.f32 0.0, %v2253
        %v2255 = vpop.f32.mrf.mxu0
        %v2256 = vadd.f32 0.0, %v2255
        %2257 = vmatprep.mubr.f32.mxu0 0.0
        %2258 = vmatmul.mubr.f32.gmra.mxu0 %v2084
        %v2259 = vpop.f32.mrf.mxu0
        %v2260 = vadd.f32 0.0, %v2259
        %v2261 = vpop.f32.mrf.mxu0
        %v2262 = vadd.f32 0.0, %v2261
        %2263 = vdwg.mxu0
        %v2264 = vadd.f32 %v2058, %v2153
        %v2265 = vadd.f32 %v2059, %v2155
        %v2266 = vadd.f32 %v2060, %v2242
        %v2267 = vadd.f32 %v2061, %v2244
        %v2268 = vadd.f32 %v2062, %v2159
        %v2269 = vadd.f32 %v2063, %v2161
        %v2270 = vadd.f32 %v2064, %v2248
        %v2271 = vadd.f32 %v2065, %v2250
        %v2272 = vadd.f32 %v2066, %v2165
        %v2273 = vadd.f32 %v2067, %v2167
        %v2274 = vadd.f32 %v2068, %v2254
        %v2275 = vadd.f32 %v2069, %v2256
        %v2276 = vadd.f32 %v2070, %v2171
        %v2277 = vadd.f32 %v2071, %v2173
        %v2278 = vadd.f32 %v2072, %v2260
        %v2279 = vadd.f32 %v2073, %v2262
        %v2281 = vsel %vm216, %v210, 0
        %v2284 = vsel %vm216, %v211, 0
        %v2287 = vsel %vm216, %v212, 0
        %v2290 = vsel %vm216, %v213, 0
        %2292 = vmatprep.subr.mxu0 0.0
        %2293 = vmatpush1.msra.mxu0 0.0
        %2294 = vmatprep.subr.mxu0 0.0
        %2295 = vmatpush1.msra.mxu0 0.0
        %2296 = vmatprep.subr.mxu0 0.0
        %2297 = vmatpush1.msra.mxu0 0.0
        %2298 = vmatprep.subr.mxu0 0.0
        %2299 = vmatpush1.msra.mxu0 0.0
        %2300 = vmatprep.subr.mxu0 0.0
        %2301 = vmatpush1.msra.mxu0 0.0
        %2302 = vmatprep.subr.mxu0 0.0
        %2303 = vmatpush1.msra.mxu0 0.0
        %2304 = vmatprep.subr.mxu0 0.0
        %2305 = vmatpush1.msra.mxu0 0.0
        %2306 = vmatprep.subr.mxu0 0.0
        %2307 = vmatpush1.msra.mxu0 0.0
        %2308 = vmatprep.subr.mxu0 0.0
        %2309 = vmatpush1.msra.mxu0 0.0
        %2310 = vmatprep.subr.mxu0 0.0
        %2311 = vmatpush1.msra.mxu0 0.0
        %2312 = vmatprep.subr.mxu0 0.0
        %2313 = vmatpush1.msra.mxu0 0.0
        %2314 = vmatprep.subr.mxu0 0.0
        %2315 = vmatpush1.msra.mxu0 0.0
        %2316 = vmatprep.subr.mxu0 0.0
        %2317 = vmatpush1.msra.mxu0 0.0
        %2318 = vmatprep.subr.mxu0 0.0
        %2319 = vmatpush1.msra.mxu0 0.0
        %2320 = vmatprep.subr.mxu0 %v183
        %2321 = vmatpush1.msra.mxu0 %v182
        %2322 = vmatprep.subr.mxu0 %v179
        %2323 = vmatpush1.msra.mxu0 %v178
        %2324 = vmatprep.subr.mxu0 0.0
        %2325 = vmatpush2.msra.mxu0 0.0
        %2326 = vmatprep.subr.mxu0 0.0
        %2327 = vmatpush2.msra.mxu0 0.0
        %2328 = vmatprep.subr.mxu0 0.0
        %2329 = vmatpush2.msra.mxu0 0.0
        %2330 = vmatprep.subr.mxu0 0.0
        %2331 = vmatpush2.msra.mxu0 0.0
        %2332 = vmatprep.subr.mxu0 0.0
        %2333 = vmatpush2.msra.mxu0 0.0
        %2334 = vmatprep.subr.mxu0 0.0
        %2335 = vmatpush2.msra.mxu0 0.0
        %2336 = vmatprep.subr.mxu0 0.0
        %2337 = vmatpush2.msra.mxu0 0.0
        %2338 = vmatprep.subr.mxu0 0.0
        %2339 = vmatpush2.msra.mxu0 0.0
        %2340 = vmatprep.subr.mxu0 0.0
        %2341 = vmatpush2.msra.mxu0 0.0
        %2342 = vmatprep.subr.mxu0 0.0
        %2343 = vmatpush2.msra.mxu0 0.0
        %2344 = vmatprep.subr.mxu0 0.0
        %2345 = vmatpush2.msra.mxu0 0.0
        %2346 = vmatprep.subr.mxu0 0.0
        %2347 = vmatpush2.msra.mxu0 0.0
        %2348 = vmatprep.subr.mxu0 0.0
        %2349 = vmatpush2.msra.mxu0 0.0
        %2350 = vmatprep.subr.mxu0 0.0
        %2351 = vmatpush2.msra.mxu0 0.0
        %2352 = vmatprep.subr.mxu0 0.0
        %2353 = vmatpush2.msra.mxu0 0.0
        %2354 = vmatprep.subr.mxu0 0.0
        %2355 = vmatpush2.msra.mxu0 0.0
        %2356 = vmatprep.mubr.f32.mxu0 0.0
        %2357 = vmatmul.mubr.f32.gmra.mxu0 %v2281
        %v2358 = vpop.f32.mrf.mxu0
        %v2359 = vadd.f32 0.0, %v2358
        %v2360 = vpop.f32.mrf.mxu0
        %v2361 = vadd.f32 0.0, %v2360
        %2362 = vmatprep.mubr.f32.mxu0 0.0
        %2363 = vmatmul.mubr.f32.gmra.mxu0 %v2284
        %v2364 = vpop.f32.mrf.mxu0
        %v2365 = vadd.f32 0.0, %v2364
        %v2366 = vpop.f32.mrf.mxu0
        %v2367 = vadd.f32 0.0, %v2366
        %2368 = vmatprep.mubr.f32.mxu0 0.0
        %2369 = vmatmul.mubr.f32.gmra.mxu0 %v2287
        %v2370 = vpop.f32.mrf.mxu0
        %v2371 = vadd.f32 0.0, %v2370
        %v2372 = vpop.f32.mrf.mxu0
        %v2373 = vadd.f32 0.0, %v2372
        %2374 = vmatprep.mubr.f32.mxu0 0.0
        %2375 = vmatmul.mubr.f32.gmra.mxu0 %v2290
        %v2376 = vpop.f32.mrf.mxu0
        %v2377 = vadd.f32 0.0, %v2376
        %v2378 = vpop.f32.mrf.mxu0
        %v2379 = vadd.f32 0.0, %v2378
        %2380 = vdwg.mxu0
        %2381 = vmatprep.subr.mxu0 0.0
        %2382 = vmatpush1.msra.mxu0 0.0
        %2383 = vmatprep.subr.mxu0 0.0
        %2384 = vmatpush1.msra.mxu0 0.0
        %2385 = vmatprep.subr.mxu0 0.0
        %2386 = vmatpush1.msra.mxu0 0.0
        %2387 = vmatprep.subr.mxu0 0.0
        %2388 = vmatpush1.msra.mxu0 0.0
        %2389 = vmatprep.subr.mxu0 0.0
        %2390 = vmatpush1.msra.mxu0 0.0
        %2391 = vmatprep.subr.mxu0 0.0
        %2392 = vmatpush1.msra.mxu0 0.0
        %2393 = vmatprep.subr.mxu0 0.0
        %2394 = vmatpush1.msra.mxu0 0.0
        %2395 = vmatprep.subr.mxu0 0.0
        %2396 = vmatpush1.msra.mxu0 0.0
        %2397 = vmatprep.subr.mxu0 0.0
        %2398 = vmatpush1.msra.mxu0 0.0
        %2399 = vmatprep.subr.mxu0 0.0
        %2400 = vmatpush1.msra.mxu0 0.0
        %2401 = vmatprep.subr.mxu0 0.0
        %2402 = vmatpush1.msra.mxu0 0.0
        %2403 = vmatprep.subr.mxu0 0.0
        %2404 = vmatpush1.msra.mxu0 0.0
        %2405 = vmatprep.subr.mxu0 0.0
        %2406 = vmatpush1.msra.mxu0 0.0
        %2407 = vmatprep.subr.mxu0 0.0
        %2408 = vmatpush1.msra.mxu0 0.0
        %2409 = vmatprep.subr.mxu0 %v185
        %2410 = vmatpush1.msra.mxu0 %v184
        %2411 = vmatprep.subr.mxu0 %v181
        %2412 = vmatpush1.msra.mxu0 %v180
        %2413 = vmatprep.subr.mxu0 0.0
        %2414 = vmatpush2.msra.mxu0 0.0
        %2415 = vmatprep.subr.mxu0 0.0
        %2416 = vmatpush2.msra.mxu0 0.0
        %2417 = vmatprep.subr.mxu0 0.0
        %2418 = vmatpush2.msra.mxu0 0.0
        %2419 = vmatprep.subr.mxu0 0.0
        %2420 = vmatpush2.msra.mxu0 0.0
        %2421 = vmatprep.subr.mxu0 0.0
        %2422 = vmatpush2.msra.mxu0 0.0
        %2423 = vmatprep.subr.mxu0 0.0
        %2424 = vmatpush2.msra.mxu0 0.0
        %2425 = vmatprep.subr.mxu0 0.0
        %2426 = vmatpush2.msra.mxu0 0.0
        %2427 = vmatprep.subr.mxu0 0.0
        %2428 = vmatpush2.msra.mxu0 0.0
        %2429 = vmatprep.subr.mxu0 0.0
        %2430 = vmatpush2.msra.mxu0 0.0
        %2431 = vmatprep.subr.mxu0 0.0
        %2432 = vmatpush2.msra.mxu0 0.0
        %2433 = vmatprep.subr.mxu0 0.0
        %2434 = vmatpush2.msra.mxu0 0.0
        %2435 = vmatprep.subr.mxu0 0.0
        %2436 = vmatpush2.msra.mxu0 0.0
        %2437 = vmatprep.subr.mxu0 0.0
        %2438 = vmatpush2.msra.mxu0 0.0
        %2439 = vmatprep.subr.mxu0 0.0
        %2440 = vmatpush2.msra.mxu0 0.0
        %2441 = vmatprep.subr.mxu0 0.0
        %2442 = vmatpush2.msra.mxu0 0.0
        %2443 = vmatprep.subr.mxu0 0.0
        %2444 = vmatpush2.msra.mxu0 0.0
        %2445 = vmatprep.mubr.f32.mxu0 0.0
        %2446 = vmatmul.mubr.f32.gmra.mxu0 %v2281
        %v2447 = vpop.f32.mrf.mxu0
        %v2448 = vadd.f32 0.0, %v2447
        %v2449 = vpop.f32.mrf.mxu0
        %v2450 = vadd.f32 0.0, %v2449
        %2451 = vmatprep.mubr.f32.mxu0 0.0
        %2452 = vmatmul.mubr.f32.gmra.mxu0 %v2284
        %v2453 = vpop.f32.mrf.mxu0
        %v2454 = vadd.f32 0.0, %v2453
        %v2455 = vpop.f32.mrf.mxu0
        %v2456 = vadd.f32 0.0, %v2455
        %2457 = vmatprep.mubr.f32.mxu0 0.0
        %2458 = vmatmul.mubr.f32.gmra.mxu0 %v2287
        %v2459 = vpop.f32.mrf.mxu0
        %v2460 = vadd.f32 0.0, %v2459
        %v2461 = vpop.f32.mrf.mxu0
        %v2462 = vadd.f32 0.0, %v2461
        %2463 = vmatprep.mubr.f32.mxu0 0.0
        %2464 = vmatmul.mubr.f32.gmra.mxu0 %v2290
        %v2465 = vpop.f32.mrf.mxu0
        %v2466 = vadd.f32 0.0, %v2465
        %v2467 = vpop.f32.mrf.mxu0
        %v2468 = vadd.f32 0.0, %v2467
        %2469 = vdwg.mxu0
        %v2470 = vadd.f32 %v2264, %v2359
        %v2471 = vadd.f32 %v2265, %v2361
        %v2472 = vadd.f32 %v2266, %v2448
        %v2473 = vadd.f32 %v2267, %v2450
        %v2474 = vadd.f32 %v2268, %v2365
        %v2475 = vadd.f32 %v2269, %v2367
        %v2476 = vadd.f32 %v2270, %v2454
        %v2477 = vadd.f32 %v2271, %v2456
        %v2478 = vadd.f32 %v2272, %v2371
        %v2479 = vadd.f32 %v2273, %v2373
        %v2480 = vadd.f32 %v2274, %v2460
        %v2481 = vadd.f32 %v2275, %v2462
        %v2482 = vadd.f32 %v2276, %v2377
        %v2483 = vadd.f32 %v2277, %v2379
        %v2484 = vadd.f32 %v2278, %v2466
        %v2485 = vadd.f32 %v2279, %v2468
        %v2486 = vmax.f32 %v2470, 0.0
        %v2487 = vmax.f32 %v2471, 0.0
        %v2488 = vmax.f32 %v2472, 0.0
        %v2489 = vmax.f32 %v2473, 0.0
        %v2490 = vmax.f32 %v2474, 0.0
        %v2491 = vmax.f32 %v2475, 0.0
        %v2492 = vmax.f32 %v2476, 0.0
        %v2493 = vmax.f32 %v2477, 0.0
        %v2494 = vmax.f32 %v2478, 0.0
        %v2495 = vmax.f32 %v2479, 0.0
        %v2496 = vmax.f32 %v2480, 0.0
        %v2497 = vmax.f32 %v2481, 0.0
        %v2498 = vmax.f32 %v2482, 0.0
        %v2499 = vmax.f32 %v2483, 0.0
        %v2500 = vmax.f32 %v2484, 0.0
        %v2501 = vmax.f32 %v2485, 0.0
        %2503 = vset.pattern.permute.xlu0 0
        %2504 = vperm.xlu0 %2503, %v215
        %v2505 = vpop.permute.xlu0 %2504
        %vm2507 = vcmask 261120
        %v2509 = vsel %vm2507, %v214, 0
        %2511 = vmatprep.subr.mxu0 0.0
        %2512 = vmatpush1.msra.mxu0 0.0
        %2513 = vmatprep.subr.mxu0 0.0
        %2514 = vmatpush1.msra.mxu0 0.0
        %2515 = vmatprep.subr.mxu0 0.0
        %2516 = vmatpush1.msra.mxu0 0.0
        %2517 = vmatprep.subr.mxu0 0.0
        %2518 = vmatpush1.msra.mxu0 0.0
        %2519 = vmatprep.subr.mxu0 0.0
        %2520 = vmatpush1.msra.mxu0 0.0
        %2521 = vmatprep.subr.mxu0 0.0
        %2522 = vmatpush1.msra.mxu0 0.0
        %2523 = vmatprep.subr.mxu0 0.0
        %2524 = vmatpush1.msra.mxu0 0.0
        %2525 = vmatprep.subr.mxu0 0.0
        %2526 = vmatpush1.msra.mxu0 0.0
        %2527 = vmatprep.subr.mxu0 0.0
        %2528 = vmatpush1.msra.mxu0 0.0
        %2529 = vmatprep.subr.mxu0 0.0
        %2530 = vmatpush1.msra.mxu0 0.0
        %2531 = vmatprep.subr.mxu0 0.0
        %2532 = vmatpush1.msra.mxu0 0.0
        %2533 = vmatprep.subr.mxu0 0.0
        %2534 = vmatpush1.msra.mxu0 0.0
        %2535 = vmatprep.subr.mxu0 %v2499
        %2536 = vmatpush1.msra.mxu0 %v2498
        %2537 = vmatprep.subr.mxu0 %v2495
        %2538 = vmatpush1.msra.mxu0 %v2494
        %2539 = vmatprep.subr.mxu0 %v2491
        %2540 = vmatpush1.msra.mxu0 %v2490
        %2541 = vmatprep.subr.mxu0 %v2487
        %2542 = vmatpush1.msra.mxu0 %v2486
        %2543 = vmatprep.subr.mxu0 0.0
        %2544 = vmatpush2.msra.mxu0 0.0
        %2545 = vmatprep.subr.mxu0 0.0
        %2546 = vmatpush2.msra.mxu0 0.0
        %2547 = vmatprep.subr.mxu0 0.0
        %2548 = vmatpush2.msra.mxu0 0.0
        %2549 = vmatprep.subr.mxu0 0.0
        %2550 = vmatpush2.msra.mxu0 0.0
        %2551 = vmatprep.subr.mxu0 0.0
        %2552 = vmatpush2.msra.mxu0 0.0
        %2553 = vmatprep.subr.mxu0 0.0
        %2554 = vmatpush2.msra.mxu0 0.0
        %2555 = vmatprep.subr.mxu0 0.0
        %2556 = vmatpush2.msra.mxu0 0.0
        %2557 = vmatprep.subr.mxu0 0.0
        %2558 = vmatpush2.msra.mxu0 0.0
        %2559 = vmatprep.subr.mxu0 0.0
        %2560 = vmatpush2.msra.mxu0 0.0
        %2561 = vmatprep.subr.mxu0 0.0
        %2562 = vmatpush2.msra.mxu0 0.0
        %2563 = vmatprep.subr.mxu0 0.0
        %2564 = vmatpush2.msra.mxu0 0.0
        %2565 = vmatprep.subr.mxu0 0.0
        %2566 = vmatpush2.msra.mxu0 0.0
        %2567 = vmatprep.subr.mxu0 0.0
        %2568 = vmatpush2.msra.mxu0 0.0
        %2569 = vmatprep.subr.mxu0 0.0
        %2570 = vmatpush2.msra.mxu0 0.0
        %2571 = vmatprep.subr.mxu0 0.0
        %2572 = vmatpush2.msra.mxu0 0.0
        %2573 = vmatprep.subr.mxu0 0.0
        %2574 = vmatpush2.msra.mxu0 0.0
        %2575 = vmatprep.mubr.f32.mxu0 0.0
        %2576 = vmatmul.mubr.f32.gmra.mxu0 %v2509
        %v2577 = vpop.f32.mrf.mxu0
        %v2578 = vadd.f32 %v2505, %v2577
        %v2579 = vpop.f32.mrf.mxu0
        %v2580 = vadd.f32 %v2505, %v2579
        %2581 = vdwg.mxu0
        %2582 = vmatprep.subr.mxu0 0.0
        %2583 = vmatpush1.msra.mxu0 0.0
        %2584 = vmatprep.subr.mxu0 0.0
        %2585 = vmatpush1.msra.mxu0 0.0
        %2586 = vmatprep.subr.mxu0 0.0
        %2587 = vmatpush1.msra.mxu0 0.0
        %2588 = vmatprep.subr.mxu0 0.0
        %2589 = vmatpush1.msra.mxu0 0.0
        %2590 = vmatprep.subr.mxu0 0.0
        %2591 = vmatpush1.msra.mxu0 0.0
        %2592 = vmatprep.subr.mxu0 0.0
        %2593 = vmatpush1.msra.mxu0 0.0
        %2594 = vmatprep.subr.mxu0 0.0
        %2595 = vmatpush1.msra.mxu0 0.0
        %2596 = vmatprep.subr.mxu0 0.0
        %2597 = vmatpush1.msra.mxu0 0.0
        %2598 = vmatprep.subr.mxu0 0.0
        %2599 = vmatpush1.msra.mxu0 0.0
        %2600 = vmatprep.subr.mxu0 0.0
        %2601 = vmatpush1.msra.mxu0 0.0
        %2602 = vmatprep.subr.mxu0 0.0
        %2603 = vmatpush1.msra.mxu0 0.0
        %2604 = vmatprep.subr.mxu0 0.0
        %2605 = vmatpush1.msra.mxu0 0.0
        %2606 = vmatprep.subr.mxu0 %v2501
        %2607 = vmatpush1.msra.mxu0 %v2500
        %2608 = vmatprep.subr.mxu0 %v2497
        %2609 = vmatpush1.msra.mxu0 %v2496
        %2610 = vmatprep.subr.mxu0 %v2493
        %2611 = vmatpush1.msra.mxu0 %v2492
        %2612 = vmatprep.subr.mxu0 %v2489
        %2613 = vmatpush1.msra.mxu0 %v2488
        %2614 = vmatprep.subr.mxu0 0.0
        %2615 = vmatpush2.msra.mxu0 0.0
        %2616 = vmatprep.subr.mxu0 0.0
        %2617 = vmatpush2.msra.mxu0 0.0
        %2618 = vmatprep.subr.mxu0 0.0
        %2619 = vmatpush2.msra.mxu0 0.0
        %2620 = vmatprep.subr.mxu0 0.0
        %2621 = vmatpush2.msra.mxu0 0.0
        %2622 = vmatprep.subr.mxu0 0.0
        %2623 = vmatpush2.msra.mxu0 0.0
        %2624 = vmatprep.subr.mxu0 0.0
        %2625 = vmatpush2.msra.mxu0 0.0
        %2626 = vmatprep.subr.mxu0 0.0
        %2627 = vmatpush2.msra.mxu0 0.0
        %2628 = vmatprep.subr.mxu0 0.0
        %2629 = vmatpush2.msra.mxu0 0.0
        %2630 = vmatprep.subr.mxu0 0.0
        %2631 = vmatpush2.msra.mxu0 0.0
        %2632 = vmatprep.subr.mxu0 0.0
        %2633 = vmatpush2.msra.mxu0 0.0
        %2634 = vmatprep.subr.mxu0 0.0
        %2635 = vmatpush2.msra.mxu0 0.0
        %2636 = vmatprep.subr.mxu0 0.0
        %2637 = vmatpush2.msra.mxu0 0.0
        %2638 = vmatprep.subr.mxu0 0.0
        %2639 = vmatpush2.msra.mxu0 0.0
        %2640 = vmatprep.subr.mxu0 0.0
        %2641 = vmatpush2.msra.mxu0 0.0
        %2642 = vmatprep.subr.mxu0 0.0
        %2643 = vmatpush2.msra.mxu0 0.0
        %2644 = vmatprep.subr.mxu0 0.0
        %2645 = vmatpush2.msra.mxu0 0.0
        %2646 = vmatprep.mubr.f32.mxu0 0.0
        %2647 = vmatmul.mubr.f32.gmra.mxu0 %v2509
        %v2648 = vpop.f32.mrf.mxu0
        %v2649 = vadd.f32 %v2505, %v2648
        %v2650 = vpop.f32.mrf.mxu0
        %v2651 = vadd.f32 %v2505, %v2650
        %2652 = vdwg.mxu0
        %v2657 = vcombine.low %v2578, %v2580
        %v2658 = vcombine.low %v2649, %v2651
        %2661 = vst [vmem:[%s175] sm:$0x77] %v2657
        %2662 = vst [vmem:[%s175 + $0x8] sm:$0x77] %v2658
        %s2663 = sand.u32 %s71, 1
        %s2664 = scalar_lea.sflag [#allocation4], %s2663
        %s2665 = sand.u32 %s71, 1
        %s2666 = smul.addr %s2665, 16
        %s2667 = scalar_lea.vmem [#allocation3], %s2666
        // Predicated region
        $region52: #{tpu_custom_call.1} parent=46 // pred_check
          %p2668 = pneg %p81
        $region53: #{tpu_custom_call.1} parent=46 // pred_check_branch
          %2670 = sbr.rel (%p2668) target = $region55
        $region54: #{tpu_custom_call.1} parent=46 // pred_region
          %s2671 = smul.u32 4, %s16
          %s2673 = ssub.s32 256, 256
          %2674 = vsyncadd %s2664, %s2673
          %s2675 = smul.addr %s2671, 64
          %s2676 = scalar_lea.hbm %s2, %s2675
          %s2678 = sshll.u32 %s2667, 4
          %s2679 = int_to_ptr.vmem [resolvable:$true] %s2678
          %2681 = dma.vmem_to_hbm [thread:$0]  %s2679, 256, %s2676, %s2664
        $region55: #{tpu_custom_call.1} parent=46 // pred_fallthru
          _
      $region47: #{tpu_custom_call.1} parent=5 // pred_fallthru
        _
      %p2682 = scmp.le.s32.totalorder 2, %s11
      // Predicated region
      $region56: #{tpu_custom_call.1} parent=5 // pred_check
        %p2683 = pneg %p2682
      $region57: #{tpu_custom_call.1} parent=5 // pred_check_branch
        %2685 = sbr.rel (%p2683) target = $region59
      $region58: #{tpu_custom_call.1} parent=5 // pred_region
        %s2686 = ssub.s32 %s11, 2
        // Predicated region
        $region60: #{tpu_custom_call.1} parent=58 // pred_check
          %p2687 = pneg %p87
        $region61: #{tpu_custom_call.1} parent=58 // pred_check_branch
          %2689 = sbr.rel (%p2687) target = $region63
        $region62: #{tpu_custom_call.1} parent=58 // pred_region
          %s2690 = sand.u32 %s72, 1
          %s2691 = scalar_lea.sflag [#allocation4], %s2690
          %s2692 = sand.u32 %s72, 1
          %s2693 = smul.addr %s2692, 16
          %s2694 = scalar_lea.vmem [#allocation3], %s2693
          %2695 = dma.done %s2691, 256
        $region63: #{tpu_custom_call.1} parent=58 // pred_fallthru
          _
      $region59: #{tpu_custom_call.1} parent=5 // pred_fallthru
        _
    $region6: #{tpu_custom_call.1} parent=1 // loop_footer
      %s15 = sadd.s32 1, %s11
    $region7: #{tpu_custom_call.1} parent=1 // loop_footer_branch
      %10 = sbr.rel target = $region3
    $region8: #{tpu_custom_call.1} parent=1 // loop_exit
      _
    %2696 = vsyncpa [#allocation4], 1
    %s2697 = scalar_lea.sflag [#allocation4], 1
    %2698 = vsyncpa %s2697, 1

</llo_original>
